<compile_context>
chip_gen: v7x
topology: tpu7x:2x2x1
jax: 0.10.0
libtpu: 0.0.40
codegen_flags: <defaults>
</compile_context>

<pallas_src>
import math

import jax
import jax.numpy as jnp
from jax.experimental import pallas as pl
from jax.experimental.pallas import tpu as pltpu

LN_EPS = 1e-5
LANE = 128          # TPU lane width; hidden/output feature dims padded to this.
VEC_ROWS = 24       # bias / LayerNorm table rows (23 used, padded to 24).

# Row indices into the packed (VEC_ROWS, LANE) bias / LayerNorm table.
IB1, IG1, IBE1 = 0, 1, 2
IB2, IG2, IBE2 = 3, 4, 5
IBQ, IBK, IBV = 6, 7, 8
IBO = 9
IB3, IG3, IBE3 = 10, 11, 12
IB4, IG4, IBE4 = 13, 14, 15
IB5, IG5, IBE5 = 16, 17, 18
IB6, IG6, IBE6 = 19, 20, 21
IBOUT = 22

# Slice indices into the stacked (7, LANE, LANE) weight array.
IW2, IWO, IW3, IW4, IW5, IW6, IWOUT = range(7)


def _round_up(x, m):
    return ((x + m - 1) // m) * m


def _choose_batch_tile(batch, seq_len, target_rows):
    """Largest divisor of `batch` whose row tile (<= target_rows) keeps whole
    attention windows inside one tile; falls back to a single full tile if the
    row tile would violate the sublane-of-8 block rule."""
    max_bpt = max(1, target_rows // seq_len)
    bpt = 1
    for d in range(1, min(batch, max_bpt) + 1):
        if batch % d == 0:
            bpt = d
    tile_m = bpt * seq_len
    if tile_m % 8 != 0 and tile_m != batch * seq_len:
        # seq_len not a sublane multiple: use one whole-rows tile (full-extent
        # block is always legal) instead of a misaligned tile.
        bpt, tile_m = batch, batch * seq_len
    return bpt, tile_m


def make_dnn_forward(num_points, hidden_size, output_points, seq_len,
                     num_heads=1, target_rows_per_tile=2048):
    """target_rows_per_tile: ~2048 is v7x-safe (64 MiB VMEM/TC); 4096-8192 is
    a good choice on v5e/v6e (128 MiB VMEM). Keep >= 256-512 at large batch."""
    assert hidden_size % num_heads == 0
    assert num_points <= LANE and hidden_size <= LANE and output_points <= LANE
    head_dim = hidden_size // num_heads
    inv_scale = 1.0 / math.sqrt(head_dim)
    half = hidden_size // 2
    inv_h = 1.0 / hidden_size
    inv_hf = 1.0 / half
    np_pad = _round_up(num_points, 16)   # bf16 sublane packing for the fc1 K dim

    def forward(x_ncw, packed):
        """x_ncw: (batch, num_points, seq_length) float32 (PyTorch layout)."""
        w1, w_all, w_qkv, vec = packed
        batch = x_ncw.shape[0]
        rows = batch * seq_len
        bpt, tile_m = _choose_batch_tile(batch, seq_len, target_rows_per_tile)
        grid_m = rows // tile_m

        def dnn_kernel(x_ref, w1_ref, w_ref, wqkv_ref, vec_ref, out_ref):
            vec_v = vec_ref[...]                                   # (24, 128) f32
            lane = jax.lax.broadcasted_iota(jnp.int32, (1, LANE), 1)
            mask_h = (lane < hidden_size).astype(jnp.float32)
            mask_hf = (lane < half).astype(jnp.float32)

            def row(i):                                            # (1, 128) f32
                return vec_v[i:i + 1, :]

            def linear(a_bf16, w_idx, b_idx):
                return jnp.dot(a_bf16, w_ref[w_idx],
                               preferred_element_type=jnp.float32) + row(b_idx)

            def ln_relu(y, g_idx, be_idx, mask, inv_n):
                # LayerNorm over the true feature count (f32 math); padded
                # lanes stay exactly 0 because gamma/beta rows are zero-padded.
                # Result is cast to bf16 once (halves live VMEM footprint).
                mu = jnp.sum(y, axis=-1, keepdims=True) * inv_n
                d = (y - mu) * mask
                var = jnp.sum(d * d, axis=-1, keepdims=True) * inv_n
                z = d * jax.lax.rsqrt(var + LN_EPS) * row(g_idx) + row(be_idx)
                return jnp.maximum(z, 0.0).astype(jnp.bfloat16)

            # fc1: contract over K = np_pad directly (no 128-lane-padded input
            # in HBM); the fc1 weight carries the 128-lane output padding.
            x = x_ref[...]                                         # (tile_m, np_pad) bf16
            y1 = jnp.dot(x, w1_ref[...],
                         preferred_element_type=jnp.float32) + row(IB1)
            x1 = ln_relu(y1, IG1, IBE1, mask_h, inv_h)             # ln1 + relu
            x2 = ln_relu(linear(x1, IW2, IB2), IG2, IBE2, mask_h, inv_h)

            # ---- multi-head self-attention (fused QKV projection) ----
            qkv = jnp.dot(x2, wqkv_ref[...],
                          preferred_element_type=jnp.float32)      # (tile_m, 384)
            q = (qkv[:, 0:LANE] + row(IBQ)).astype(jnp.bfloat16)
            k = (qkv[:, LANE:2 * LANE] + row(IBK)).astype(jnp.bfloat16)
            v = (qkv[:, 2 * LANE:3 * LANE] + row(IBV)).astype(jnp.bfloat16)

            # Safe reshapes: tile_m = bpt * seq_len and seq_len is a sublane
            # multiple (8) in the tiled path, so no (8,128) boundary crossing.
            q3 = q.reshape(bpt, seq_len, LANE)
            k3 = k.reshape(bpt, seq_len, LANE)
            v3 = v.reshape(bpt, seq_len, LANE)

            def softmax_ctx(qh, kh, vh):
                s = jnp.einsum('bqd,bkd->bqk', qh, kh,
                               preferred_element_type=jnp.float32) * inv_scale
                s = s - jnp.max(s, axis=-1, keepdims=True)
                e = jnp.exp(s)
                a = e * pl.reciprocal(jnp.sum(e, axis=-1, keepdims=True),
                                      approx=True)
                return jnp.einsum('bqk,bkd->bqd', a.astype(jnp.bfloat16), vh,
                                  preferred_element_type=jnp.float32)

            if num_heads == 1:
                # Padded lanes of Q/K/V are zero, so contracting over all 128
                # lanes equals contracting over the real head_dim.
                ctx3 = softmax_ctx(q3, k3, v3)
            else:
                # Lane-masked heads: full-128-lane matmuls, each head's context
                # lands directly in its own lanes (no slices / concatenate).
                lane3 = jax.lax.broadcasted_iota(jnp.int32, (1, 1, LANE), 2)
                ctx3 = jnp.zeros((bpt, seq_len, LANE), jnp.float32)
                for h in range(num_heads):
                    lo = h * head_dim
                    hmask = jnp.logical_and(lane3 >= lo, lane3 < lo + head_dim
                                            ).astype(jnp.bfloat16)
                    ctx3 = ctx3 + softmax_ctx(q3 * hmask, k3, v3 * hmask)

            ctx = ctx3.reshape(tile_m, LANE).astype(jnp.bfloat16)
            attn_out = jnp.dot(ctx, w_ref[IWO],
                               preferred_element_type=jnp.float32) + row(IBO)
            x2r = (x2.astype(jnp.float32) + attn_out).astype(jnp.bfloat16)

            # fc3..fc6 with LayerNorm/ReLU and residuals (dropout = identity)
            x3 = ln_relu(linear(x2r, IW3, IB3), IG3, IBE3, mask_hf, inv_hf)
            x4 = ln_relu(linear(x3, IW4, IB4), IG4, IBE4, mask_hf, inv_hf) + x3
            x5 = ln_relu(linear(x4, IW5, IB5), IG5, IBE5, mask_hf, inv_hf)
            x6 = ln_relu(linear(x5, IW6, IB6), IG6, IBE6, mask_hf, inv_hf) + x5

            out_ref[...] = jnp.dot(x6, w_ref[IWOUT],
                                   preferred_element_type=jnp.float32) + row(IBOUT)

        # --- prologue: permute(0,2,1) + flatten batch + bf16 (no 128 pad) ---
        x = jnp.transpose(x_ncw, (0, 2, 1)).reshape(rows, num_points)
        if np_pad != num_points:
            x = jnp.pad(x, ((0, 0), (0, np_pad - num_points)))
        x = x.astype(jnp.bfloat16)

        # Per-tile VMEM budget: double-buffered x/out + resident weights +
        # live intermediates (generous f32 accounting), clamped to a v7x-safe
        # cap (64 MiB physical VMEM per TC on v7x -> never request all of it).
        io_bytes = 2 * (tile_m * np_pad * 2 + tile_m * LANE * 4)
        weight_bytes = (np_pad * LANE + 7 * LANE * LANE + LANE * 3 * LANE) * 2 \
                       + VEC_ROWS * LANE * 4
        live_bytes = 16 * tile_m * LANE * 4
        vmem_limit = int(min(48 * 1024 * 1024,
                             max(32 * 1024 * 1024,
                                 io_bytes + weight_bytes + live_bytes)))

        out = pl.pallas_call(
            dnn_kernel,
            out_shape=jax.ShapeDtypeStruct((rows, LANE), jnp.float32),
            grid_spec=pltpu.PrefetchScalarGridSpec(
                num_scalar_prefetch=0,
                grid=(grid_m,),
                in_specs=[
                    pl.BlockSpec((tile_m, np_pad), lambda i: (i, 0)),
                    pl.BlockSpec(w1.shape, lambda i: (0, 0)),        # resident
                    pl.BlockSpec(w_all.shape, lambda i: (0, 0, 0)),  # resident
                    pl.BlockSpec(w_qkv.shape, lambda i: (0, 0)),     # resident
                    pl.BlockSpec(vec.shape, lambda i: (0, 0)),       # resident
                ],
                out_specs=pl.BlockSpec((tile_m, LANE), lambda i: (i, 0)),
            ),
            compiler_params=pltpu.CompilerParams(
                dimension_semantics=("parallel",),   # tiles are independent
                vmem_limit_bytes=vmem_limit,
            ),
        )(x, w1, w_all, w_qkv, vec)

        # --- epilogue: drop lane padding, restore (batch, output_points, seq) ---
        out = out[:, :output_points].reshape(batch, seq_len, output_points)
        return jnp.transpose(out, (0, 2, 1))

    return forward


# --------------------------- parameter handling ---------------------------

def init_torch_like_params(key, num_points, hidden_size, output_points):
    """Deterministic synthetic parameters in PyTorch nn.Linear layout."""
    half = hidden_size // 2
    keys = iter(jax.random.split(key, 40))

    def lin(din, dout):
        bound = 1.0 / math.sqrt(din)
        w = jax.random.uniform(next(keys), (dout, din), jnp.float32, -bound, bound)
        b = jax.random.uniform(next(keys), (dout,), jnp.float32, -bound, bound)
        return w, b

    def ln(d):
        return jnp.ones((d,), jnp.float32), jnp.zeros((d,), jnp.float32)

    p = {}
    p["fc1"] = lin(num_points, hidden_size); p["ln1"] = ln(hidden_size)
    p["fc2"] = lin(hidden_size, hidden_size); p["ln2"] = ln(hidden_size)
    p["q"] = lin(hidden_size, hidden_size)
    p["k"] = lin(hidden_size, hidden_size)
    p["v"] = lin(hidden_size, hidden_size)
    p["o"] = lin(hidden_size, hidden_size)
    p["fc3"] = lin(hidden_size, half); p["ln3"] = ln(half)
    p["fc4"] = lin(half, half); p["ln4"] = ln(half)
    p["fc5"] = lin(half, half); p["ln5"] = ln(half)
    p["fc6"] = lin(half, half); p["ln6"] = ln(half)
    p["out"] = lin(half, output_points)
    return p


def pack_params(p):
    """Pack all weights/biases into 4 lane-padded arrays for the kernel.
    Padding rows/cols are zero -> padded lanes stay exactly 0 in the kernel."""
    num_points = p["fc1"][0].shape[1]
    np_pad = _round_up(num_points, 16)

    def pad2(w, r=LANE, c=LANE):
        return jnp.pad(w, ((0, r - w.shape[0]), (0, c - w.shape[1])))

    def padv(v):
        return jnp.pad(v, ((0, LANE - v.shape[0]),))

    def wT(name):  # torch (out, in) -> padded (in, out)
        return pad2(p[name][0].T)

    # fc1 weight: only the output dim is lane-padded; K stays = num_points(~16)
    w1 = pad2(p["fc1"][0].T, r=np_pad).astype(jnp.bfloat16)        # (np_pad, 128)

    w_all = jnp.stack([wT("fc2"), wT("o"), wT("fc3"), wT("fc4"),
                       wT("fc5"), wT("fc6"), wT("out")]
                      ).astype(jnp.bfloat16)                       # (7, 128, 128)

    w_qkv = jnp.concatenate([pad2(p["q"][0].T),
                             pad2(p["k"][0].T),
                             pad2(p["v"][0].T)], axis=1).astype(jnp.bfloat16)  # (128, 384)

    rows = [
        p["fc1"][1], p["ln1"][0], p["ln1"][1],
        p["fc2"][1], p["ln2"][0], p["ln2"][1],
        p["q"][1], p["k"][1], p["v"][1],
        p["o"][1],
        p["fc3"][1], p["ln3"][0], p["ln3"][1],
        p["fc4"][1], p["ln4"][0], p["ln4"][1],
        p["fc5"][1], p["ln5"][0], p["ln5"][1],
        p["fc6"][1], p["ln6"][0], p["ln6"][1],
        p["out"][1],
    ]
    vec = jnp.stack([padv(r) for r in rows])
    vec = jnp.pad(vec, ((0, VEC_ROWS - vec.shape[0]), (0, 0))).astype(jnp.float32)
    return w1, w_all, w_qkv, vec


if __name__ == "__main__":
    # Small shapes consistent with the module's forward.
    B, num_points, seq_len = 2, 16, 8
    hidden_size, output_points, num_heads = 32, 8, 1

    key = jax.random.PRNGKey(0)
    kx, kp = jax.random.split(key)

    x = jax.random.normal(kx, (B, num_points, seq_len), jnp.float32)  # PyTorch-style input
    params = init_torch_like_params(kp, num_points, hidden_size, output_points)
    packed = pack_params(params)

    fwd = make_dnn_forward(num_points, hidden_size, output_points, seq_len, num_heads)
    out = fwd(x, packed)
    out = jax.block_until_ready(out)

    assert out.shape == (B, output_points, seq_len)
    assert bool(jnp.all(jnp.isfinite(out)))
    print("KERNEL_OK")
</pallas_src>

<mosaic_0001>
module attributes {stable_mosaic.version = 11 : i64} {
  func.func @dnn_kernel(%arg0: i32, %arg1: memref<16x16xbf16, #tpu.memory_space<vmem>>, %arg2: memref<16x128xbf16, #tpu.memory_space<vmem>>, %arg3: memref<7x128x128xbf16, #tpu.memory_space<vmem>>, %arg4: memref<128x384xbf16, #tpu.memory_space<vmem>>, %arg5: memref<24x128xf32, #tpu.memory_space<vmem>>, %arg6: memref<16x128xf32, #tpu.memory_space<vmem>>) attributes {dimension_semantics = [#tpu.dimension_semantics<parallel>], iteration_bounds = array<i64: 1>, scalar_prefetch = 0 : i64, scratch_operands = 0 : i64, tpu.core_type = #tpu.core_type<tc>, window_params = [{transform_indices = @transform_0, window_bounds = array<i64: 16, 16>}, {pipeline_mode = #tpu.pipeline_mode<synchronous>, transform_indices = @transform_1, window_bounds = array<i64: 16, 128>}, {pipeline_mode = #tpu.pipeline_mode<synchronous>, transform_indices = @transform_2, window_bounds = array<i64: 7, 128, 128>}, {pipeline_mode = #tpu.pipeline_mode<synchronous>, transform_indices = @transform_3, window_bounds = array<i64: 128, 384>}, {pipeline_mode = #tpu.pipeline_mode<synchronous>, transform_indices = @transform_4, window_bounds = array<i64: 24, 128>}, {transform_indices = @transform_5, window_bounds = array<i64: 16, 128>}]} {
    %c0 = arith.constant 0 : index
    %c0_0 = arith.constant 0 : index
    %0 = vector.load %arg5[%c0, %c0_0] : memref<24x128xf32, #tpu.memory_space<vmem>>, vector<24x128xf32>
    %1 = tpu.iota {dimensions = array<i32: 1>} : vector<1x128xi32>
    %c32_i32 = arith.constant 32 : i32
    %2 = vector.broadcast %c32_i32 : i32 to vector<1x128xi32>
    %3 = arith.cmpi slt, %1, %2 : vector<1x128xi32>
    %4 = arith.extui %3 : vector<1x128xi1> to vector<1x128xi32>
    %5 = arith.sitofp %4 : vector<1x128xi32> to vector<1x128xf32>
    %c16_i32 = arith.constant 16 : i32
    %6 = vector.broadcast %c16_i32 : i32 to vector<1x128xi32>
    %7 = arith.cmpi slt, %1, %6 : vector<1x128xi32>
    %8 = arith.extui %7 : vector<1x128xi1> to vector<1x128xi32>
    %9 = arith.sitofp %8 : vector<1x128xi32> to vector<1x128xf32>
    %c0_1 = arith.constant 0 : index
    %c0_2 = arith.constant 0 : index
    %10 = vector.load %arg1[%c0_1, %c0_2] : memref<16x16xbf16, #tpu.memory_space<vmem>>, vector<16x16xbf16>
    %c0_3 = arith.constant 0 : index
    %c0_4 = arith.constant 0 : index
    %11 = vector.load %arg2[%c0_3, %c0_4] : memref<16x128xbf16, #tpu.memory_space<vmem>>, vector<16x128xbf16>
    %cst = arith.constant dense<0.000000e+00> : vector<16x128xf32>
    %12 = tpu.matmul %10, %11, %cst {dimension_numbers = #tpu.dot_dimension_numbers<[1], [0], [0], [1], [0, 0, 1, 1], [], []>} : vector<16x16xbf16>, vector<16x128xbf16>, vector<16x128xf32> -> vector<16x128xf32>
    %13 = vector.extract_strided_slice %0 {offsets = [0, 0], sizes = [1, 128], strides = [1, 1]} : vector<24x128xf32> to vector<1x128xf32>
    %14 = vector.broadcast %13 : vector<1x128xf32> to vector<16x128xf32>
    %15 = arith.addf %12, %14 : vector<16x128xf32>
    %cst_5 = arith.constant dense<0.000000e+00> : vector<16xf32>
    %16 = vector.multi_reduction <add>, %15, %cst_5 [1] : vector<16x128xf32> to vector<16xf32>
    %17 = vector.shape_cast %16 : vector<16xf32> to vector<16x1xf32>
    %cst_6 = arith.constant 3.125000e-02 : f32
    %18 = vector.broadcast %cst_6 : f32 to vector<16x1xf32>
    %19 = arith.mulf %17, %18 : vector<16x1xf32>
    %20 = vector.broadcast %19 : vector<16x1xf32> to vector<16x128xf32>
    %21 = arith.subf %15, %20 : vector<16x128xf32>
    %22 = vector.broadcast %5 : vector<1x128xf32> to vector<16x128xf32>
    %23 = arith.mulf %21, %22 : vector<16x128xf32>
    %24 = arith.mulf %23, %23 : vector<16x128xf32>
    %cst_7 = arith.constant dense<0.000000e+00> : vector<16xf32>
    %25 = vector.multi_reduction <add>, %24, %cst_7 [1] : vector<16x128xf32> to vector<16xf32>
    %26 = vector.shape_cast %25 : vector<16xf32> to vector<16x1xf32>
    %cst_8 = arith.constant 3.125000e-02 : f32
    %27 = vector.broadcast %cst_8 : f32 to vector<16x1xf32>
    %28 = arith.mulf %26, %27 : vector<16x1xf32>
    %cst_9 = arith.constant 9.99999974E-6 : f32
    %29 = vector.broadcast %cst_9 : f32 to vector<16x1xf32>
    %30 = arith.addf %28, %29 : vector<16x1xf32>
    %31 = math.rsqrt %30 : vector<16x1xf32>
    %32 = vector.broadcast %31 : vector<16x1xf32> to vector<16x128xf32>
    %33 = arith.mulf %23, %32 : vector<16x128xf32>
    %34 = vector.extract_strided_slice %0 {offsets = [1, 0], sizes = [1, 128], strides = [1, 1]} : vector<24x128xf32> to vector<1x128xf32>
    %35 = vector.broadcast %34 : vector<1x128xf32> to vector<16x128xf32>
    %36 = arith.mulf %33, %35 : vector<16x128xf32>
    %37 = vector.extract_strided_slice %0 {offsets = [2, 0], sizes = [1, 128], strides = [1, 1]} : vector<24x128xf32> to vector<1x128xf32>
    %38 = vector.broadcast %37 : vector<1x128xf32> to vector<16x128xf32>
    %39 = arith.addf %36, %38 : vector<16x128xf32>
    %cst_10 = arith.constant 0.000000e+00 : f32
    %40 = vector.broadcast %cst_10 : f32 to vector<16x128xf32>
    %41 = arith.maximumf %39, %40 : vector<16x128xf32>
    %42 = arith.truncf %41 : vector<16x128xf32> to vector<16x128xbf16>
    %c0_11 = arith.constant 0 : index
    %c0_12 = arith.constant 0 : index
    %c0_13 = arith.constant 0 : index
    %43 = vector.load %arg3[%c0_11, %c0_12, %c0_13] : memref<7x128x128xbf16, #tpu.memory_space<vmem>>, vector<1x128x128xbf16>
    %44 = vector.shape_cast %43 : vector<1x128x128xbf16> to vector<128x128xbf16>
    %cst_14 = arith.constant dense<0.000000e+00> : vector<16x128xf32>
    %45 = tpu.matmul %42, %44, %cst_14 {dimension_numbers = #tpu.dot_dimension_numbers<[1], [0], [0], [1], [0, 0, 1, 1], [], []>} : vector<16x128xbf16>, vector<128x128xbf16>, vector<16x128xf32> -> vector<16x128xf32>
    %46 = vector.extract_strided_slice %0 {offsets = [3, 0], sizes = [1, 128], strides = [1, 1]} : vector<24x128xf32> to vector<1x128xf32>
    %47 = vector.broadcast %46 : vector<1x128xf32> to vector<16x128xf32>
    %48 = arith.addf %45, %47 : vector<16x128xf32>
    %cst_15 = arith.constant dense<0.000000e+00> : vector<16xf32>
    %49 = vector.multi_reduction <add>, %48, %cst_15 [1] : vector<16x128xf32> to vector<16xf32>
    %50 = vector.shape_cast %49 : vector<16xf32> to vector<16x1xf32>
    %cst_16 = arith.constant 3.125000e-02 : f32
    %51 = vector.broadcast %cst_16 : f32 to vector<16x1xf32>
    %52 = arith.mulf %50, %51 : vector<16x1xf32>
    %53 = vector.broadcast %52 : vector<16x1xf32> to vector<16x128xf32>
    %54 = arith.subf %48, %53 : vector<16x128xf32>
    %55 = vector.broadcast %5 : vector<1x128xf32> to vector<16x128xf32>
    %56 = arith.mulf %54, %55 : vector<16x128xf32>
    %57 = arith.mulf %56, %56 : vector<16x128xf32>
    %cst_17 = arith.constant dense<0.000000e+00> : vector<16xf32>
    %58 = vector.multi_reduction <add>, %57, %cst_17 [1] : vector<16x128xf32> to vector<16xf32>
    %59 = vector.shape_cast %58 : vector<16xf32> to vector<16x1xf32>
    %cst_18 = arith.constant 3.125000e-02 : f32
    %60 = vector.broadcast %cst_18 : f32 to vector<16x1xf32>
    %61 = arith.mulf %59, %60 : vector<16x1xf32>
    %cst_19 = arith.constant 9.99999974E-6 : f32
    %62 = vector.broadcast %cst_19 : f32 to vector<16x1xf32>
    %63 = arith.addf %61, %62 : vector<16x1xf32>
    %64 = math.rsqrt %63 : vector<16x1xf32>
    %65 = vector.broadcast %64 : vector<16x1xf32> to vector<16x128xf32>
    %66 = arith.mulf %56, %65 : vector<16x128xf32>
    %67 = vector.extract_strided_slice %0 {offsets = [4, 0], sizes = [1, 128], strides = [1, 1]} : vector<24x128xf32> to vector<1x128xf32>
    %68 = vector.broadcast %67 : vector<1x128xf32> to vector<16x128xf32>
    %69 = arith.mulf %66, %68 : vector<16x128xf32>
    %70 = vector.extract_strided_slice %0 {offsets = [5, 0], sizes = [1, 128], strides = [1, 1]} : vector<24x128xf32> to vector<1x128xf32>
    %71 = vector.broadcast %70 : vector<1x128xf32> to vector<16x128xf32>
    %72 = arith.addf %69, %71 : vector<16x128xf32>
    %cst_20 = arith.constant 0.000000e+00 : f32
    %73 = vector.broadcast %cst_20 : f32 to vector<16x128xf32>
    %74 = arith.maximumf %72, %73 : vector<16x128xf32>
    %75 = arith.truncf %74 : vector<16x128xf32> to vector<16x128xbf16>
    %c0_21 = arith.constant 0 : index
    %c0_22 = arith.constant 0 : index
    %76 = vector.load %arg4[%c0_21, %c0_22] : memref<128x384xbf16, #tpu.memory_space<vmem>>, vector<128x384xbf16>
    %cst_23 = arith.constant dense<0.000000e+00> : vector<16x384xf32>
    %77 = tpu.matmul %75, %76, %cst_23 {dimension_numbers = #tpu.dot_dimension_numbers<[1], [0], [0], [1], [0, 0, 1, 1], [], []>} : vector<16x128xbf16>, vector<128x384xbf16>, vector<16x384xf32> -> vector<16x384xf32>
    %78 = vector.extract_strided_slice %77 {offsets = [0, 0], sizes = [16, 128], strides = [1, 1]} : vector<16x384xf32> to vector<16x128xf32>
    %79 = vector.extract_strided_slice %0 {offsets = [6, 0], sizes = [1, 128], strides = [1, 1]} : vector<24x128xf32> to vector<1x128xf32>
    %80 = vector.broadcast %79 : vector<1x128xf32> to vector<16x128xf32>
    %81 = arith.addf %78, %80 : vector<16x128xf32>
    %82 = arith.truncf %81 : vector<16x128xf32> to vector<16x128xbf16>
    %83 = vector.extract_strided_slice %77 {offsets = [0, 128], sizes = [16, 128], strides = [1, 1]} : vector<16x384xf32> to vector<16x128xf32>
    %84 = vector.extract_strided_slice %0 {offsets = [7, 0], sizes = [1, 128], strides = [1, 1]} : vector<24x128xf32> to vector<1x128xf32>
    %85 = vector.broadcast %84 : vector<1x128xf32> to vector<16x128xf32>
    %86 = arith.addf %83, %85 : vector<16x128xf32>
    %87 = arith.truncf %86 : vector<16x128xf32> to vector<16x128xbf16>
    %88 = vector.extract_strided_slice %77 {offsets = [0, 256], sizes = [16, 128], strides = [1, 1]} : vector<16x384xf32> to vector<16x128xf32>
    %89 = vector.extract_strided_slice %0 {offsets = [8, 0], sizes = [1, 128], strides = [1, 1]} : vector<24x128xf32> to vector<1x128xf32>
    %90 = vector.broadcast %89 : vector<1x128xf32> to vector<16x128xf32>
    %91 = arith.addf %88, %90 : vector<16x128xf32>
    %92 = arith.truncf %91 : vector<16x128xf32> to vector<16x128xbf16>
    %93 = vector.shape_cast %82 : vector<16x128xbf16> to vector<2x8x128xbf16>
    %94 = vector.shape_cast %87 : vector<16x128xbf16> to vector<2x8x128xbf16>
    %95 = vector.shape_cast %92 : vector<16x128xbf16> to vector<2x8x128xbf16>
    "tpu.trace_start"() <{level = 10 : i32, message = "bqd,bkd->bqk"}> : () -> ()
    %cst_24 = arith.constant dense<0.000000e+00> : vector<2x8x8xf32>
    %96 = tpu.matmul %93, %94, %cst_24 {dimension_numbers = #tpu.dot_dimension_numbers<[2], [2], [1], [1], [0, 0, 0, 1, 1, 1], [0], [0]>} : vector<2x8x128xbf16>, vector<2x8x128xbf16>, vector<2x8x8xf32> -> vector<2x8x8xf32>
    "tpu.trace_stop"() : () -> ()
    %cst_25 = arith.constant 0.176776692 : f32
    %97 = vector.broadcast %cst_25 : f32 to vector<2x8x8xf32>
    %98 = arith.mulf %96, %97 : vector<2x8x8xf32>
    %cst_26 = arith.constant dense<0xFF800000> : vector<2x8xf32>
    %99 = vector.multi_reduction <maximumf>, %98, %cst_26 [2] : vector<2x8x8xf32> to vector<2x8xf32>
    %100 = vector.shape_cast %99 : vector<2x8xf32> to vector<2x8x1xf32>
    %101 = vector.broadcast %100 : vector<2x8x1xf32> to vector<2x8x8xf32>
    %102 = arith.subf %98, %101 : vector<2x8x8xf32>
    %103 = math.exp %102 : vector<2x8x8xf32>
    %cst_27 = arith.constant dense<0.000000e+00> : vector<2x8xf32>
    %104 = vector.multi_reduction <add>, %103, %cst_27 [2] : vector<2x8x8xf32> to vector<2x8xf32>
    %105 = vector.shape_cast %104 : vector<2x8xf32> to vector<2x8x1xf32>
    %106 = tpu.reciprocal %105 {approx = true} : vector<2x8x1xf32> -> vector<2x8x1xf32>
    %107 = vector.broadcast %106 : vector<2x8x1xf32> to vector<2x8x8xf32>
    %108 = arith.mulf %103, %107 : vector<2x8x8xf32>
    %109 = arith.truncf %108 : vector<2x8x8xf32> to vector<2x8x8xbf16>
    "tpu.trace_start"() <{level = 10 : i32, message = "bqk,bkd->bqd"}> : () -> ()
    %cst_28 = arith.constant dense<0.000000e+00> : vector<2x8x128xf32>
    %110 = tpu.matmul %109, %95, %cst_28 {dimension_numbers = #tpu.dot_dimension_numbers<[2], [1], [1], [2], [0, 0, 0, 1, 1, 2], [0], [0]>} : vector<2x8x8xbf16>, vector<2x8x128xbf16>, vector<2x8x128xf32> -> vector<2x8x128xf32>
    "tpu.trace_stop"() : () -> ()
    %111 = vector.shape_cast %110 : vector<2x8x128xf32> to vector<16x128xf32>
    %112 = arith.truncf %111 : vector<16x128xf32> to vector<16x128xbf16>
    %c1 = arith.constant 1 : index
    %c0_29 = arith.constant 0 : index
    %c0_30 = arith.constant 0 : index
    %113 = vector.load %arg3[%c1, %c0_29, %c0_30] : memref<7x128x128xbf16, #tpu.memory_space<vmem>>, vector<1x128x128xbf16>
    %114 = vector.shape_cast %113 : vector<1x128x128xbf16> to vector<128x128xbf16>
    %cst_31 = arith.constant dense<0.000000e+00> : vector<16x128xf32>
    %115 = tpu.matmul %112, %114, %cst_31 {dimension_numbers = #tpu.dot_dimension_numbers<[1], [0], [0], [1], [0, 0, 1, 1], [], []>} : vector<16x128xbf16>, vector<128x128xbf16>, vector<16x128xf32> -> vector<16x128xf32>
    %116 = vector.extract_strided_slice %0 {offsets = [9, 0], sizes = [1, 128], strides = [1, 1]} : vector<24x128xf32> to vector<1x128xf32>
    %117 = vector.broadcast %116 : vector<1x128xf32> to vector<16x128xf32>
    %118 = arith.addf %115, %117 : vector<16x128xf32>
    %119 = arith.extf %75 : vector<16x128xbf16> to vector<16x128xf32>
    %120 = arith.addf %119, %118 : vector<16x128xf32>
    %121 = arith.truncf %120 : vector<16x128xf32> to vector<16x128xbf16>
    %c2 = arith.constant 2 : index
    %c0_32 = arith.constant 0 : index
    %c0_33 = arith.constant 0 : index
    %122 = vector.load %arg3[%c2, %c0_32, %c0_33] : memref<7x128x128xbf16, #tpu.memory_space<vmem>>, vector<1x128x128xbf16>
    %123 = vector.shape_cast %122 : vector<1x128x128xbf16> to vector<128x128xbf16>
    %cst_34 = arith.constant dense<0.000000e+00> : vector<16x128xf32>
    %124 = tpu.matmul %121, %123, %cst_34 {dimension_numbers = #tpu.dot_dimension_numbers<[1], [0], [0], [1], [0, 0, 1, 1], [], []>} : vector<16x128xbf16>, vector<128x128xbf16>, vector<16x128xf32> -> vector<16x128xf32>
    %125 = vector.extract_strided_slice %0 {offsets = [10, 0], sizes = [1, 128], strides = [1, 1]} : vector<24x128xf32> to vector<1x128xf32>
    %126 = vector.broadcast %125 : vector<1x128xf32> to vector<16x128xf32>
    %127 = arith.addf %124, %126 : vector<16x128xf32>
    %cst_35 = arith.constant dense<0.000000e+00> : vector<16xf32>
    %128 = vector.multi_reduction <add>, %127, %cst_35 [1] : vector<16x128xf32> to vector<16xf32>
    %129 = vector.shape_cast %128 : vector<16xf32> to vector<16x1xf32>
    %cst_36 = arith.constant 6.250000e-02 : f32
    %130 = vector.broadcast %cst_36 : f32 to vector<16x1xf32>
    %131 = arith.mulf %129, %130 : vector<16x1xf32>
    %132 = vector.broadcast %131 : vector<16x1xf32> to vector<16x128xf32>
    %133 = arith.subf %127, %132 : vector<16x128xf32>
    %134 = vector.broadcast %9 : vector<1x128xf32> to vector<16x128xf32>
    %135 = arith.mulf %133, %134 : vector<16x128xf32>
    %136 = arith.mulf %135, %135 : vector<16x128xf32>
    %cst_37 = arith.constant dense<0.000000e+00> : vector<16xf32>
    %137 = vector.multi_reduction <add>, %136, %cst_37 [1] : vector<16x128xf32> to vector<16xf32>
    %138 = vector.shape_cast %137 : vector<16xf32> to vector<16x1xf32>
    %cst_38 = arith.constant 6.250000e-02 : f32
    %139 = vector.broadcast %cst_38 : f32 to vector<16x1xf32>
    %140 = arith.mulf %138, %139 : vector<16x1xf32>
    %cst_39 = arith.constant 9.99999974E-6 : f32
    %141 = vector.broadcast %cst_39 : f32 to vector<16x1xf32>
    %142 = arith.addf %140, %141 : vector<16x1xf32>
    %143 = math.rsqrt %142 : vector<16x1xf32>
    %144 = vector.broadcast %143 : vector<16x1xf32> to vector<16x128xf32>
    %145 = arith.mulf %135, %144 : vector<16x128xf32>
    %146 = vector.extract_strided_slice %0 {offsets = [11, 0], sizes = [1, 128], strides = [1, 1]} : vector<24x128xf32> to vector<1x128xf32>
    %147 = vector.broadcast %146 : vector<1x128xf32> to vector<16x128xf32>
    %148 = arith.mulf %145, %147 : vector<16x128xf32>
    %149 = vector.extract_strided_slice %0 {offsets = [12, 0], sizes = [1, 128], strides = [1, 1]} : vector<24x128xf32> to vector<1x128xf32>
    %150 = vector.broadcast %149 : vector<1x128xf32> to vector<16x128xf32>
    %151 = arith.addf %148, %150 : vector<16x128xf32>
    %cst_40 = arith.constant 0.000000e+00 : f32
    %152 = vector.broadcast %cst_40 : f32 to vector<16x128xf32>
    %153 = arith.maximumf %151, %152 : vector<16x128xf32>
    %154 = arith.truncf %153 : vector<16x128xf32> to vector<16x128xbf16>
    %c3 = arith.constant 3 : index
    %c0_41 = arith.constant 0 : index
    %c0_42 = arith.constant 0 : index
    %155 = vector.load %arg3[%c3, %c0_41, %c0_42] : memref<7x128x128xbf16, #tpu.memory_space<vmem>>, vector<1x128x128xbf16>
    %156 = vector.shape_cast %155 : vector<1x128x128xbf16> to vector<128x128xbf16>
    %cst_43 = arith.constant dense<0.000000e+00> : vector<16x128xf32>
    %157 = tpu.matmul %154, %156, %cst_43 {dimension_numbers = #tpu.dot_dimension_numbers<[1], [0], [0], [1], [0, 0, 1, 1], [], []>} : vector<16x128xbf16>, vector<128x128xbf16>, vector<16x128xf32> -> vector<16x128xf32>
    %158 = vector.extract_strided_slice %0 {offsets = [13, 0], sizes = [1, 128], strides = [1, 1]} : vector<24x128xf32> to vector<1x128xf32>
    %159 = vector.broadcast %158 : vector<1x128xf32> to vector<16x128xf32>
    %160 = arith.addf %157, %159 : vector<16x128xf32>
    %cst_44 = arith.constant dense<0.000000e+00> : vector<16xf32>
    %161 = vector.multi_reduction <add>, %160, %cst_44 [1] : vector<16x128xf32> to vector<16xf32>
    %162 = vector.shape_cast %161 : vector<16xf32> to vector<16x1xf32>
    %cst_45 = arith.constant 6.250000e-02 : f32
    %163 = vector.broadcast %cst_45 : f32 to vector<16x1xf32>
    %164 = arith.mulf %162, %163 : vector<16x1xf32>
    %165 = vector.broadcast %164 : vector<16x1xf32> to vector<16x128xf32>
    %166 = arith.subf %160, %165 : vector<16x128xf32>
    %167 = vector.broadcast %9 : vector<1x128xf32> to vector<16x128xf32>
    %168 = arith.mulf %166, %167 : vector<16x128xf32>
    %169 = arith.mulf %168, %168 : vector<16x128xf32>
    %cst_46 = arith.constant dense<0.000000e+00> : vector<16xf32>
    %170 = vector.multi_reduction <add>, %169, %cst_46 [1] : vector<16x128xf32> to vector<16xf32>
    %171 = vector.shape_cast %170 : vector<16xf32> to vector<16x1xf32>
    %cst_47 = arith.constant 6.250000e-02 : f32
    %172 = vector.broadcast %cst_47 : f32 to vector<16x1xf32>
    %173 = arith.mulf %171, %172 : vector<16x1xf32>
    %cst_48 = arith.constant 9.99999974E-6 : f32
    %174 = vector.broadcast %cst_48 : f32 to vector<16x1xf32>
    %175 = arith.addf %173, %174 : vector<16x1xf32>
    %176 = math.rsqrt %175 : vector<16x1xf32>
    %177 = vector.broadcast %176 : vector<16x1xf32> to vector<16x128xf32>
    %178 = arith.mulf %168, %177 : vector<16x128xf32>
    %179 = vector.extract_strided_slice %0 {offsets = [14, 0], sizes = [1, 128], strides = [1, 1]} : vector<24x128xf32> to vector<1x128xf32>
    %180 = vector.broadcast %179 : vector<1x128xf32> to vector<16x128xf32>
    %181 = arith.mulf %178, %180 : vector<16x128xf32>
    %182 = vector.extract_strided_slice %0 {offsets = [15, 0], sizes = [1, 128], strides = [1, 1]} : vector<24x128xf32> to vector<1x128xf32>
    %183 = vector.broadcast %182 : vector<1x128xf32> to vector<16x128xf32>
    %184 = arith.addf %181, %183 : vector<16x128xf32>
    %cst_49 = arith.constant 0.000000e+00 : f32
    %185 = vector.broadcast %cst_49 : f32 to vector<16x128xf32>
    %186 = arith.maximumf %184, %185 : vector<16x128xf32>
    %187 = arith.truncf %186 : vector<16x128xf32> to vector<16x128xbf16>
    %188 = arith.addf %187, %154 : vector<16x128xbf16>
    %c4 = arith.constant 4 : index
    %c0_50 = arith.constant 0 : index
    %c0_51 = arith.constant 0 : index
    %189 = vector.load %arg3[%c4, %c0_50, %c0_51] : memref<7x128x128xbf16, #tpu.memory_space<vmem>>, vector<1x128x128xbf16>
    %190 = vector.shape_cast %189 : vector<1x128x128xbf16> to vector<128x128xbf16>
    %cst_52 = arith.constant dense<0.000000e+00> : vector<16x128xf32>
    %191 = tpu.matmul %188, %190, %cst_52 {dimension_numbers = #tpu.dot_dimension_numbers<[1], [0], [0], [1], [0, 0, 1, 1], [], []>} : vector<16x128xbf16>, vector<128x128xbf16>, vector<16x128xf32> -> vector<16x128xf32>
    %192 = vector.extract_strided_slice %0 {offsets = [16, 0], sizes = [1, 128], strides = [1, 1]} : vector<24x128xf32> to vector<1x128xf32>
    %193 = vector.broadcast %192 : vector<1x128xf32> to vector<16x128xf32>
    %194 = arith.addf %191, %193 : vector<16x128xf32>
    %cst_53 = arith.constant dense<0.000000e+00> : vector<16xf32>
    %195 = vector.multi_reduction <add>, %194, %cst_53 [1] : vector<16x128xf32> to vector<16xf32>
    %196 = vector.shape_cast %195 : vector<16xf32> to vector<16x1xf32>
    %cst_54 = arith.constant 6.250000e-02 : f32
    %197 = vector.broadcast %cst_54 : f32 to vector<16x1xf32>
    %198 = arith.mulf %196, %197 : vector<16x1xf32>
    %199 = vector.broadcast %198 : vector<16x1xf32> to vector<16x128xf32>
    %200 = arith.subf %194, %199 : vector<16x128xf32>
    %201 = vector.broadcast %9 : vector<1x128xf32> to vector<16x128xf32>
    %202 = arith.mulf %200, %201 : vector<16x128xf32>
    %203 = arith.mulf %202, %202 : vector<16x128xf32>
    %cst_55 = arith.constant dense<0.000000e+00> : vector<16xf32>
    %204 = vector.multi_reduction <add>, %203, %cst_55 [1] : vector<16x128xf32> to vector<16xf32>
    %205 = vector.shape_cast %204 : vector<16xf32> to vector<16x1xf32>
    %cst_56 = arith.constant 6.250000e-02 : f32
    %206 = vector.broadcast %cst_56 : f32 to vector<16x1xf32>
    %207 = arith.mulf %205, %206 : vector<16x1xf32>
    %cst_57 = arith.constant 9.99999974E-6 : f32
    %208 = vector.broadcast %cst_57 : f32 to vector<16x1xf32>
    %209 = arith.addf %207, %208 : vector<16x1xf32>
    %210 = math.rsqrt %209 : vector<16x1xf32>
    %211 = vector.broadcast %210 : vector<16x1xf32> to vector<16x128xf32>
    %212 = arith.mulf %202, %211 : vector<16x128xf32>
    %213 = vector.extract_strided_slice %0 {offsets = [17, 0], sizes = [1, 128], strides = [1, 1]} : vector<24x128xf32> to vector<1x128xf32>
    %214 = vector.broadcast %213 : vector<1x128xf32> to vector<16x128xf32>
    %215 = arith.mulf %212, %214 : vector<16x128xf32>
    %216 = vector.extract_strided_slice %0 {offsets = [18, 0], sizes = [1, 128], strides = [1, 1]} : vector<24x128xf32> to vector<1x128xf32>
    %217 = vector.broadcast %216 : vector<1x128xf32> to vector<16x128xf32>
    %218 = arith.addf %215, %217 : vector<16x128xf32>
    %cst_58 = arith.constant 0.000000e+00 : f32
    %219 = vector.broadcast %cst_58 : f32 to vector<16x128xf32>
    %220 = arith.maximumf %218, %219 : vector<16x128xf32>
    %221 = arith.truncf %220 : vector<16x128xf32> to vector<16x128xbf16>
    %c5 = arith.constant 5 : index
    %c0_59 = arith.constant 0 : index
    %c0_60 = arith.constant 0 : index
    %222 = vector.load %arg3[%c5, %c0_59, %c0_60] : memref<7x128x128xbf16, #tpu.memory_space<vmem>>, vector<1x128x128xbf16>
    %223 = vector.shape_cast %222 : vector<1x128x128xbf16> to vector<128x128xbf16>
    %cst_61 = arith.constant dense<0.000000e+00> : vector<16x128xf32>
    %224 = tpu.matmul %221, %223, %cst_61 {dimension_numbers = #tpu.dot_dimension_numbers<[1], [0], [0], [1], [0, 0, 1, 1], [], []>} : vector<16x128xbf16>, vector<128x128xbf16>, vector<16x128xf32> -> vector<16x128xf32>
    %225 = vector.extract_strided_slice %0 {offsets = [19, 0], sizes = [1, 128], strides = [1, 1]} : vector<24x128xf32> to vector<1x128xf32>
    %226 = vector.broadcast %225 : vector<1x128xf32> to vector<16x128xf32>
    %227 = arith.addf %224, %226 : vector<16x128xf32>
    %cst_62 = arith.constant dense<0.000000e+00> : vector<16xf32>
    %228 = vector.multi_reduction <add>, %227, %cst_62 [1] : vector<16x128xf32> to vector<16xf32>
    %229 = vector.shape_cast %228 : vector<16xf32> to vector<16x1xf32>
    %cst_63 = arith.constant 6.250000e-02 : f32
    %230 = vector.broadcast %cst_63 : f32 to vector<16x1xf32>
    %231 = arith.mulf %229, %230 : vector<16x1xf32>
    %232 = vector.broadcast %231 : vector<16x1xf32> to vector<16x128xf32>
    %233 = arith.subf %227, %232 : vector<16x128xf32>
    %234 = vector.broadcast %9 : vector<1x128xf32> to vector<16x128xf32>
    %235 = arith.mulf %233, %234 : vector<16x128xf32>
    %236 = arith.mulf %235, %235 : vector<16x128xf32>
    %cst_64 = arith.constant dense<0.000000e+00> : vector<16xf32>
    %237 = vector.multi_reduction <add>, %236, %cst_64 [1] : vector<16x128xf32> to vector<16xf32>
    %238 = vector.shape_cast %237 : vector<16xf32> to vector<16x1xf32>
    %cst_65 = arith.constant 6.250000e-02 : f32
    %239 = vector.broadcast %cst_65 : f32 to vector<16x1xf32>
    %240 = arith.mulf %238, %239 : vector<16x1xf32>
    %cst_66 = arith.constant 9.99999974E-6 : f32
    %241 = vector.broadcast %cst_66 : f32 to vector<16x1xf32>
    %242 = arith.addf %240, %241 : vector<16x1xf32>
    %243 = math.rsqrt %242 : vector<16x1xf32>
    %244 = vector.broadcast %243 : vector<16x1xf32> to vector<16x128xf32>
    %245 = arith.mulf %235, %244 : vector<16x128xf32>
    %246 = vector.extract_strided_slice %0 {offsets = [20, 0], sizes = [1, 128], strides = [1, 1]} : vector<24x128xf32> to vector<1x128xf32>
    %247 = vector.broadcast %246 : vector<1x128xf32> to vector<16x128xf32>
    %248 = arith.mulf %245, %247 : vector<16x128xf32>
    %249 = vector.extract_strided_slice %0 {offsets = [21, 0], sizes = [1, 128], strides = [1, 1]} : vector<24x128xf32> to vector<1x128xf32>
    %250 = vector.broadcast %249 : vector<1x128xf32> to vector<16x128xf32>
    %251 = arith.addf %248, %250 : vector<16x128xf32>
    %cst_67 = arith.constant 0.000000e+00 : f32
    %252 = vector.broadcast %cst_67 : f32 to vector<16x128xf32>
    %253 = arith.maximumf %251, %252 : vector<16x128xf32>
    %254 = arith.truncf %253 : vector<16x128xf32> to vector<16x128xbf16>
    %255 = arith.addf %254, %221 : vector<16x128xbf16>
    %c6 = arith.constant 6 : index
    %c0_68 = arith.constant 0 : index
    %c0_69 = arith.constant 0 : index
    %256 = vector.load %arg3[%c6, %c0_68, %c0_69] : memref<7x128x128xbf16, #tpu.memory_space<vmem>>, vector<1x128x128xbf16>
    %257 = vector.shape_cast %256 : vector<1x128x128xbf16> to vector<128x128xbf16>
    %cst_70 = arith.constant dense<0.000000e+00> : vector<16x128xf32>
    %258 = tpu.matmul %255, %257, %cst_70 {dimension_numbers = #tpu.dot_dimension_numbers<[1], [0], [0], [1], [0, 0, 1, 1], [], []>} : vector<16x128xbf16>, vector<128x128xbf16>, vector<16x128xf32> -> vector<16x128xf32>
    %259 = vector.extract_strided_slice %0 {offsets = [22, 0], sizes = [1, 128], strides = [1, 1]} : vector<24x128xf32> to vector<1x128xf32>
    %260 = vector.broadcast %259 : vector<1x128xf32> to vector<16x128xf32>
    %261 = arith.addf %258, %260 : vector<16x128xf32>
    %c0_71 = arith.constant 0 : index
    %c0_72 = arith.constant 0 : index
    %262 = vector.load %arg6[%c0_71, %c0_72] : memref<16x128xf32, #tpu.memory_space<vmem>>, vector<16x128xf32>
    tpu.vector_store %arg6[%c0_71, %c0_72], %261 {strides = array<i32>} : memref<16x128xf32, #tpu.memory_space<vmem>>, vector<16x128xf32>,
    return
  }
  func.func @transform_0(%arg0: i32) -> (i32, i32) {
    %c0_i32 = arith.constant 0 : i32
    %c0_i32_0 = arith.constant 0 : i32
    return %arg0, %c0_i32 : i32, i32
  }
  func.func @transform_1(%arg0: i32) -> (i32, i32) {
    %c0_i32 = arith.constant 0 : i32
    %c0_i32_0 = arith.constant 0 : i32
    %c0_i32_1 = arith.constant 0 : i32
    return %c0_i32, %c0_i32_0 : i32, i32
  }
  func.func @transform_2(%arg0: i32) -> (i32, i32, i32) {
    %c0_i32 = arith.constant 0 : i32
    %c0_i32_0 = arith.constant 0 : i32
    %c0_i32_1 = arith.constant 0 : i32
    %c0_i32_2 = arith.constant 0 : i32
    return %c0_i32, %c0_i32_0, %c0_i32_1 : i32, i32, i32
  }
  func.func @transform_3(%arg0: i32) -> (i32, i32) {
    %c0_i32 = arith.constant 0 : i32
    %c0_i32_0 = arith.constant 0 : i32
    %c0_i32_1 = arith.constant 0 : i32
    return %c0_i32, %c0_i32_0 : i32, i32
  }
  func.func @transform_4(%arg0: i32) -> (i32, i32) {
    %c0_i32 = arith.constant 0 : i32
    %c0_i32_0 = arith.constant 0 : i32
    %c0_i32_1 = arith.constant 0 : i32
    return %c0_i32, %c0_i32_0 : i32, i32
  }
  func.func @transform_5(%arg0: i32) -> (i32, i32) {
    %c0_i32 = arith.constant 0 : i32
    %c0_i32_0 = arith.constant 0 : i32
    return %arg0, %c0_i32 : i32, i32
  }
}

</mosaic_0001>

<llo_original>
// kernel: tpu_custom_call.1
$region0: #{tpu_custom_call.1}
  #allocation0 [shape = 'u32[]', space=smem, size = 0x4, offset = 0x4, fixed_abs, tag = 'smem constant byte address 0x4 - core index']
  #allocation1 [shape = 'u32[144,128]{1,0:T(1,128)}', space=vmem, size = 0x12000, scoped, tag = 'internal scratch']
  %s0 = inlined_call_operand.hbm [shape: bf16[16,16], index: 0, kind: input, shape index: {}]
  %s1 = inlined_call_operand.hbm [shape: bf16[16,128], index: 1, kind: input, shape index: {}]
  %s2 = inlined_call_operand.hbm [shape: bf16[7,128,128], index: 2, kind: input, shape index: {}]
  %s3 = inlined_call_operand.hbm [shape: bf16[128,384], index: 3, kind: input, shape index: {}]
  %s4 = inlined_call_operand.hbm [shape: f32[24,128], index: 4, kind: input, shape index: {}]
  %s5 = inlined_call_operand.hbm [shape: f32[16,128], index: 5, kind: output, shape index: {}]
  %s6 = sld [smem:[#allocation0]]
  $region50: #{tpu_custom_call.1} parent=0
    _
  %s8 = ssub.s32 1, %s6
  %s9 = scalar_select 0, %s8, %s6
  $region1: #{tpu_custom_call.1} parent=0
    #allocation2 [shape = 'u8[4096]{0}', space=vmem, size = 0x1000, scoped, tag = 'input window, operand 0, single buffered']
    #allocation3 [shape = 's32[1]{0}', space=sflag, size = 0x4, scoped, tag = 'scoped memory for tpu_custom_call.1']
    #allocation4 [shape = 's32[1]{0}', space=sflag, size = 0x4, scoped, tag = 'scoped memory for tpu_custom_call.1']
    #allocation5 [shape = 'u8[4096]{0}', space=vmem, size = 0x1000, scoped, tag = 'input window, operand 1, single buffered']
    #allocation6 [shape = 's32[1]{0}', space=sflag, size = 0x4, scoped, tag = 'scoped memory for tpu_custom_call.1']
    #allocation7 [shape = 'u8[229376]{0}', space=vmem, size = 0x38000, scoped, tag = 'input window, operand 2, single buffered']
    #allocation8 [shape = 'u8[98304]{0}', space=vmem, size = 0x18000, scoped, tag = 'input window, operand 3, single buffered']
    #allocation9 [shape = 's32[1]{0}', space=sflag, size = 0x4, scoped, tag = 'scoped memory for tpu_custom_call.1']
    #allocation10 [shape = 'u8[12288]{0}', space=vmem, size = 0x3000, scoped, tag = 'input window, operand 4, single buffered']
    #allocation11 [shape = 'u8[8192]{0}', space=vmem, size = 0x2000, scoped, tag = 'output window, operand 0, single buffered']
    %10 = vsyncpa [#allocation3], 0
    %11 = vsyncpa [#allocation6], 0
    %12 = vsyncpa [#allocation9], 0
    %13 = vsyncpa [#allocation4], 0
    // Predicated region
    $region2: #{tpu_custom_call.1} parent=1 // pred_check
      _
    $region3: #{tpu_custom_call.1} parent=1 // pred_check_branch
      %15 = sbr.rel (0) target = $region5
    $region4: #{tpu_custom_call.1} parent=1 // pred_region
      %s17 = ssub.s32 128, 128
      %18 = vsyncadd [#allocation3], %s17
      %s19 = sshll.u32 [#allocation2], 4
      %s20 = int_to_ptr.vmem [resolvable:$true] %s19
      %25 = dma.hbm_to_vmem [thread:$0]  %s0, 128, %s20, [#allocation3], 64, 64, 4
    $region5: #{tpu_custom_call.1} parent=1 // pred_fallthru
      _
    // Predicated region
    $region6: #{tpu_custom_call.1} parent=1 // pred_check
      _
    $region7: #{tpu_custom_call.1} parent=1 // pred_check_branch
      %27 = sbr.rel (0) target = $region9
    $region8: #{tpu_custom_call.1} parent=1 // pred_region
      %s29 = ssub.s32 128, 128
      %30 = vsyncadd [#allocation6], %s29
      %s31 = sshll.u32 [#allocation5], 4
      %s32 = int_to_ptr.vmem [resolvable:$true] %s31
      %37 = dma.hbm_to_vmem [thread:$0]  %s1, 128, %s32, [#allocation6], 64, 64, 4
    $region9: #{tpu_custom_call.1} parent=1 // pred_fallthru
      _
    // Predicated region
    $region10: #{tpu_custom_call.1} parent=1 // pred_check
      _
    $region11: #{tpu_custom_call.1} parent=1 // pred_check_branch
      %39 = sbr.rel (0) target = $region13
    $region12: #{tpu_custom_call.1} parent=1 // pred_region
      %s41 = ssub.s32 7168, 7168
      %42 = vsyncadd [#allocation6], %s41
      %s43 = sshll.u32 [#allocation7], 4
      %s44 = int_to_ptr.vmem [resolvable:$true] %s43
      %49 = dma.hbm_to_vmem [thread:$0]  %s2, 7168, %s44, [#allocation6], 64, 64, 4
    $region13: #{tpu_custom_call.1} parent=1 // pred_fallthru
      _
    // Predicated region
    $region14: #{tpu_custom_call.1} parent=1 // pred_check
      _
    $region15: #{tpu_custom_call.1} parent=1 // pred_check_branch
      %51 = sbr.rel (0) target = $region17
    $region16: #{tpu_custom_call.1} parent=1 // pred_region
      %s53 = ssub.s32 3072, 3072
      %54 = vsyncadd [#allocation9], %s53
      %s55 = sshll.u32 [#allocation8], 4
      %s56 = int_to_ptr.vmem [resolvable:$true] %s55
      %61 = dma.hbm_to_vmem [thread:$0]  %s3, 3072, %s56, [#allocation9], 192, 192, 12
    $region17: #{tpu_custom_call.1} parent=1 // pred_fallthru
      _
    // Predicated region
    $region18: #{tpu_custom_call.1} parent=1 // pred_check
      _
    $region19: #{tpu_custom_call.1} parent=1 // pred_check_branch
      %63 = sbr.rel (0) target = $region21
    $region20: #{tpu_custom_call.1} parent=1 // pred_region
      %s65 = ssub.s32 384, 384
      %66 = vsyncadd [#allocation9], %s65
      %s67 = sshll.u32 [#allocation10], 4
      %s68 = int_to_ptr.vmem [resolvable:$true] %s67
      %73 = dma.hbm_to_vmem [thread:$0]  %s4, 384, %s68, [#allocation9], 128, 128, 8
    $region21: #{tpu_custom_call.1} parent=1 // pred_fallthru
      _
    // Predicated region
    $region22: #{tpu_custom_call.1} parent=1 // pred_check
      _
    $region23: #{tpu_custom_call.1} parent=1 // pred_check_branch
      %75 = sbr.rel (0) target = $region25
    $region24: #{tpu_custom_call.1} parent=1 // pred_region
      %76 = dma.done [#allocation3], 128
    $region25: #{tpu_custom_call.1} parent=1 // pred_fallthru
      _
    // Predicated region
    $region26: #{tpu_custom_call.1} parent=1 // pred_check
      _
    $region27: #{tpu_custom_call.1} parent=1 // pred_check_branch
      %78 = sbr.rel (0) target = $region29
    $region28: #{tpu_custom_call.1} parent=1 // pred_region
      %79 = dma.done [#allocation6], 128
    $region29: #{tpu_custom_call.1} parent=1 // pred_fallthru
      _
    // Predicated region
    $region30: #{tpu_custom_call.1} parent=1 // pred_check
      _
    $region31: #{tpu_custom_call.1} parent=1 // pred_check_branch
      %81 = sbr.rel (0) target = $region33
    $region32: #{tpu_custom_call.1} parent=1 // pred_region
      %82 = dma.done [#allocation6], 7168
    $region33: #{tpu_custom_call.1} parent=1 // pred_fallthru
      _
    // Predicated region
    $region34: #{tpu_custom_call.1} parent=1 // pred_check
      _
    $region35: #{tpu_custom_call.1} parent=1 // pred_check_branch
      %84 = sbr.rel (0) target = $region37
    $region36: #{tpu_custom_call.1} parent=1 // pred_region
      %85 = dma.done [#allocation9], 3072
    $region37: #{tpu_custom_call.1} parent=1 // pred_fallthru
      _
    // Predicated region
    $region38: #{tpu_custom_call.1} parent=1 // pred_check
      _
    $region39: #{tpu_custom_call.1} parent=1 // pred_check_branch
      %87 = sbr.rel (0) target = $region41
    $region40: #{tpu_custom_call.1} parent=1 // pred_region
      %88 = dma.done [#allocation9], 384
    $region41: #{tpu_custom_call.1} parent=1 // pred_fallthru
      _
    %v90 = vld [vmem:[#allocation10] sm:$0xff]
    %v91 = vld [vmem:[#allocation10 + $0x8] sm:$0xff]
    %v92 = vld [vmem:[#allocation10 + $0x10] sm:$0xff]
    %v93 = vlaneseq
    %v94 = vand.u32 %v93, 127
    %vm95 = vcmp.lt.s32.totalorder %v94, 32
    %v96 = vsel %vm95, 1, 0
    %v97 = vcvt.s32.f32 %v96
    %vm98 = vcmp.lt.s32.totalorder %v94, 16
    %v99 = vsel %vm98, 1, 0
    %v100 = vcvt.s32.f32 %v99
    %v101 = vld [vmem:[#allocation2] sm:$0xf]
    %v102 = vld [vmem:[#allocation2 + $0x4] sm:$0xf]
    %v103 = vld [vmem:[#allocation5] sm:$0xf]
    %v104 = vld [vmem:[#allocation5 + $0x4] sm:$0xf]
    %v105 = vlaneseq
    %v106 = vshrl.u32 %v105, 7
    %v107 = vsub.s32 0, %v106
    %v108 = vrot.slane %v90, %v107
    %v111 = vunpack.c.l.b16 %v101
    %v112 = vunpack.c.l.b16 %v102
    %v113 = vpack.c.b16 %v112, %v111
    %v116 = vunpack.c.l.b16 %v103
    %v117 = vunpack.c.l.b16 %v104
    %v118 = vpack.c.b16 %v117, %v116
    %vm120 = vcmask 130048
    %v122 = vsel %vm120, %v113, 0
    %124 = vmatprep.subr.bf16.mxu0 0
    %125 = vmatpush1.bf16.msra.mxu0 %v118
    %126 = vmatprep.subr.bf16.mxu0 0
    %127 = vmatpush1.bf16.msra.mxu0 0
    %128 = vmatprep.subr.bf16.mxu0 0
    %129 = vmatpush1.bf16.msra.mxu0 0
    %130 = vmatprep.subr.bf16.mxu0 0
    %131 = vmatpush1.bf16.msra.mxu0 0
    %132 = vmatprep.subr.bf16.mxu0 0
    %133 = vmatpush1.bf16.msra.mxu0 0
    %134 = vmatprep.subr.bf16.mxu0 0
    %135 = vmatpush1.bf16.msra.mxu0 0
    %136 = vmatprep.subr.bf16.mxu0 0
    %137 = vmatpush1.bf16.msra.mxu0 0
    %138 = vmatprep.subr.bf16.mxu0 0
    %139 = vmatpush1.bf16.msra.mxu0 0
    %140 = vmatprep.subr.bf16.mxu0 0
    %141 = vmatpush1.bf16.msra.mxu0 0
    %142 = vmatprep.subr.bf16.mxu0 0
    %143 = vmatpush1.bf16.msra.mxu0 0
    %144 = vmatprep.subr.bf16.mxu0 0
    %145 = vmatpush1.bf16.msra.mxu0 0
    %146 = vmatprep.subr.bf16.mxu0 0
    %147 = vmatpush1.bf16.msra.mxu0 0
    %148 = vmatprep.subr.bf16.mxu0 0
    %149 = vmatpush1.bf16.msra.mxu0 0
    %150 = vmatprep.subr.bf16.mxu0 0
    %151 = vmatpush1.bf16.msra.mxu0 0
    %152 = vmatprep.subr.bf16.mxu0 0
    %153 = vmatpush1.bf16.msra.mxu0 0
    %154 = vmatprep.subr.bf16.mxu0 0
    %155 = vmatpush1.bf16.msra.mxu0 0
    %156 = vmatprep.mubr.bf16.mxu0 0
    %157 = vmatmul.mubr.bf16.gmra.mrb[0].mxu0 %v122
    %v158 = vpop.f32.mrb[0].mxu0
    %v159 = vadd.f32 %v108, %v158
    %v160 = vpop.f32.mrb[0].mxu0
    %v161 = vpop.f32.mrb[0].mxu0
    %v162 = vadd.f32 %v108, %v161
    %v163 = vpop.f32.mrb[0].mxu0
    %164 = vdwg.mxu0
    %165 = vadd.xlane.f32.xlu0 %v159
    %v166 = vpop.xlane.xlu0 %165
    %167 = vadd.xlane.f32.xlu0 %v162
    %v168 = vpop.xlane.xlu0 %167
    %v169 = vmul.f32 %v166, 0.03125
    %v170 = vmul.f32 %v168, 0.03125
    %v171 = vsub.f32 %v159, %v169
    %v172 = vsub.f32 %v162, %v170
    %v173 = vmul.f32 %v171, %v97
    %v174 = vmul.f32 %v172, %v97
    %v175 = vmul.f32 %v173, %v173
    %v176 = vmul.f32 %v174, %v174
    %177 = vadd.xlane.f32.xlu0 %v175
    %v178 = vpop.xlane.xlu0 %177
    %179 = vadd.xlane.f32.xlu0 %v176
    %v180 = vpop.xlane.xlu0 %179
    %v181 = vmul.f32 %v178, 0.03125
    %v182 = vmul.f32 %v180, 0.03125
    %v183 = vadd.f32 %v181, 1e-05
    %v184 = vadd.f32 %v182, 1e-05
    %v185 = vrsqrt.pop %v183
    %v186 = vrsqrt.pop %v184
    %v187 = vmul.f32 %v173, %v185
    %v188 = vmul.f32 %v174, %v186
    %v189 = vlaneseq
    %v190 = vshrl.u32 %v189, 7
    %v191 = vsub.s32 1, %v190
    %v192 = vrot.slane %v90, %v191
    %v193 = vmul.f32 %v187, %v192
    %v194 = vmul.f32 %v188, %v192
    %v195 = vlaneseq
    %v196 = vshrl.u32 %v195, 7
    %v197 = vsub.s32 2, %v196
    %v198 = vrot.slane %v90, %v197
    %v199 = vadd.f32 %v193, %v198
    %v200 = vadd.f32 %v194, %v198
    %v201 = vmax.f32 %v199, 0.0
    %v202 = vmax.f32 %v200, 0.0
    %v203 = vpack.c.bf16 %v202, %v201
    %v204 = vld [vmem:[#allocation7] sm:$0xf]
    %v205 = vld [vmem:[#allocation7 + $0x4] sm:$0xf]
    %v206 = vld [vmem:[#allocation7 + $0x8] sm:$0xf]
    %v207 = vld [vmem:[#allocation7 + $0xc] sm:$0xf]
    %v208 = vld [vmem:[#allocation7 + $0x10] sm:$0xf]
    %v209 = vld [vmem:[#allocation7 + $0x14] sm:$0xf]
    %v210 = vld [vmem:[#allocation7 + $0x18] sm:$0xf]
    %v211 = vld [vmem:[#allocation7 + $0x1c] sm:$0xf]
    %v212 = vld [vmem:[#allocation7 + $0x20] sm:$0xf]
    %v213 = vld [vmem:[#allocation7 + $0x24] sm:$0xf]
    %v214 = vld [vmem:[#allocation7 + $0x28] sm:$0xf]
    %v215 = vld [vmem:[#allocation7 + $0x2c] sm:$0xf]
    %v216 = vld [vmem:[#allocation7 + $0x30] sm:$0xf]
    %v217 = vld [vmem:[#allocation7 + $0x34] sm:$0xf]
    %v218 = vld [vmem:[#allocation7 + $0x38] sm:$0xf]
    %v219 = vld [vmem:[#allocation7 + $0x3c] sm:$0xf]
    %v220 = vlaneseq
    %v221 = vshrl.u32 %v220, 7
    %v222 = vsub.s32 3, %v221
    %v223 = vrot.slane %v90, %v222
    %v240 = vunpack.c.l.b16 %v204
    %v241 = vunpack.c.l.b16 %v205
    %v242 = vunpack.c.l.b16 %v206
    %v243 = vunpack.c.l.b16 %v207
    %v244 = vunpack.c.l.b16 %v208
    %v245 = vunpack.c.l.b16 %v209
    %v246 = vunpack.c.l.b16 %v210
    %v247 = vunpack.c.l.b16 %v211
    %v248 = vunpack.c.l.b16 %v212
    %v249 = vunpack.c.l.b16 %v213
    %v250 = vunpack.c.l.b16 %v214
    %v251 = vunpack.c.l.b16 %v215
    %v252 = vunpack.c.l.b16 %v216
    %v253 = vunpack.c.l.b16 %v217
    %v254 = vunpack.c.l.b16 %v218
    %v255 = vunpack.c.l.b16 %v219
    %v256 = vpack.c.b16 %v241, %v240
    %v257 = vpack.c.b16 %v243, %v242
    %v258 = vpack.c.b16 %v245, %v244
    %v259 = vpack.c.b16 %v247, %v246
    %v260 = vpack.c.b16 %v249, %v248
    %v261 = vpack.c.b16 %v251, %v250
    %v262 = vpack.c.b16 %v253, %v252
    %v263 = vpack.c.b16 %v255, %v254
    %272 = vmatprep.subr.bf16.mxu0 0
    %273 = vmatpush1.bf16.msra.mxu0 %v256
    %274 = vmatprep.subr.bf16.mxu0 0
    %275 = vmatpush1.bf16.msra.mxu0 %v257
    %276 = vmatprep.subr.bf16.mxu0 0
    %277 = vmatpush1.bf16.msra.mxu0 %v258
    %278 = vmatprep.subr.bf16.mxu0 0
    %279 = vmatpush1.bf16.msra.mxu0 %v259
    %280 = vmatprep.subr.bf16.mxu0 0
    %281 = vmatpush1.bf16.msra.mxu0 %v260
    %282 = vmatprep.subr.bf16.mxu0 0
    %283 = vmatpush1.bf16.msra.mxu0 %v261
    %284 = vmatprep.subr.bf16.mxu0 0
    %285 = vmatpush1.bf16.msra.mxu0 %v262
    %286 = vmatprep.subr.bf16.mxu0 0
    %287 = vmatpush1.bf16.msra.mxu0 %v263
    %288 = vmatprep.subr.bf16.mxu0 0
    %289 = vmatpush1.bf16.msra.mxu0 0
    %290 = vmatprep.subr.bf16.mxu0 0
    %291 = vmatpush1.bf16.msra.mxu0 0
    %292 = vmatprep.subr.bf16.mxu0 0
    %293 = vmatpush1.bf16.msra.mxu0 0
    %294 = vmatprep.subr.bf16.mxu0 0
    %295 = vmatpush1.bf16.msra.mxu0 0
    %296 = vmatprep.subr.bf16.mxu0 0
    %297 = vmatpush1.bf16.msra.mxu0 0
    %298 = vmatprep.subr.bf16.mxu0 0
    %299 = vmatpush1.bf16.msra.mxu0 0
    %300 = vmatprep.subr.bf16.mxu0 0
    %301 = vmatpush1.bf16.msra.mxu0 0
    %302 = vmatprep.subr.bf16.mxu0 0
    %303 = vmatpush1.bf16.msra.mxu0 0
    %304 = vmatprep.mubr.bf16.mxu0 0
    %305 = vmatmul.mubr.bf16.gmra.mrb[0].mxu0 %v203
    %v306 = vpop.f32.mrb[0].mxu0
    %v307 = vadd.f32 %v223, %v306
    %v308 = vpop.f32.mrb[0].mxu0
    %v309 = vpop.f32.mrb[0].mxu0
    %v310 = vadd.f32 %v223, %v309
    %v311 = vpop.f32.mrb[0].mxu0
    %312 = vdwg.mxu0
    %313 = vadd.xlane.f32.xlu0 %v307
    %v314 = vpop.xlane.xlu0 %313
    %315 = vadd.xlane.f32.xlu0 %v310
    %v316 = vpop.xlane.xlu0 %315
    %v317 = vmul.f32 %v314, 0.03125
    %v318 = vmul.f32 %v316, 0.03125
    %v319 = vsub.f32 %v307, %v317
    %v320 = vsub.f32 %v310, %v318
    %v321 = vmul.f32 %v319, %v97
    %v322 = vmul.f32 %v320, %v97
    %v323 = vmul.f32 %v321, %v321
    %v324 = vmul.f32 %v322, %v322
    %325 = vadd.xlane.f32.xlu0 %v323
    %v326 = vpop.xlane.xlu0 %325
    %327 = vadd.xlane.f32.xlu0 %v324
    %v328 = vpop.xlane.xlu0 %327
    %v329 = vmul.f32 %v326, 0.03125
    %v330 = vmul.f32 %v328, 0.03125
    %v331 = vadd.f32 %v329, 1e-05
    %v332 = vadd.f32 %v330, 1e-05
    %v333 = vrsqrt.pop %v331
    %v334 = vrsqrt.pop %v332
    %v335 = vmul.f32 %v321, %v333
    %v336 = vmul.f32 %v322, %v334
    %v337 = vlaneseq
    %v338 = vshrl.u32 %v337, 7
    %v339 = vsub.s32 4, %v338
    %v340 = vrot.slane %v90, %v339
    %v341 = vmul.f32 %v335, %v340
    %v342 = vmul.f32 %v336, %v340
    %v343 = vlaneseq
    %v344 = vshrl.u32 %v343, 7
    %v345 = vsub.s32 5, %v344
    %v346 = vrot.slane %v90, %v345
    %v347 = vadd.f32 %v341, %v346
    %v348 = vadd.f32 %v342, %v346
    %v349 = vmax.f32 %v347, 0.0
    %v350 = vmax.f32 %v348, 0.0
    %v351 = vpack.c.bf16 %v350, %v349
    %v352 = vld [vmem:[#allocation8] sm:$0xff]
    %v353 = vld [vmem:[#allocation8 + $0x8] sm:$0xf]
    %v354 = vld [vmem:[#allocation8 + $0xc] sm:$0xff]
    %v355 = vld [vmem:[#allocation8 + $0x14] sm:$0xf]
    %v356 = vld [vmem:[#allocation8 + $0x18] sm:$0xff]
    %v357 = vld [vmem:[#allocation8 + $0x20] sm:$0xf]
    %v358 = vld [vmem:[#allocation8 + $0x24] sm:$0xff]
    %v359 = vld [vmem:[#allocation8 + $0x2c] sm:$0xf]
    %v360 = vld [vmem:[#allocation8 + $0x30] sm:$0xff]
    %v361 = vld [vmem:[#allocation8 + $0x38] sm:$0xf]
    %v362 = vld [vmem:[#allocation8 + $0x3c] sm:$0xff]
    %v363 = vld [vmem:[#allocation8 + $0x44] sm:$0xf]
    %v364 = vld [vmem:[#allocation8 + $0x48] sm:$0xff]
    %v365 = vld [vmem:[#allocation8 + $0x50] sm:$0xf]
    %v366 = vld [vmem:[#allocation8 + $0x54] sm:$0xff]
    %v367 = vld [vmem:[#allocation8 + $0x5c] sm:$0xf]
    %v368 = vld [vmem:[#allocation8 + $0x60] sm:$0xff]
    %v369 = vld [vmem:[#allocation8 + $0x68] sm:$0xf]
    %v370 = vld [vmem:[#allocation8 + $0x6c] sm:$0xff]
    %v371 = vld [vmem:[#allocation8 + $0x74] sm:$0xf]
    %v372 = vld [vmem:[#allocation8 + $0x78] sm:$0xff]
    %v373 = vld [vmem:[#allocation8 + $0x80] sm:$0xf]
    %v374 = vld [vmem:[#allocation8 + $0x84] sm:$0xff]
    %v375 = vld [vmem:[#allocation8 + $0x8c] sm:$0xf]
    %v376 = vld [vmem:[#allocation8 + $0x90] sm:$0xff]
    %v377 = vld [vmem:[#allocation8 + $0x98] sm:$0xf]
    %v378 = vld [vmem:[#allocation8 + $0x9c] sm:$0xff]
    %v379 = vld [vmem:[#allocation8 + $0xa4] sm:$0xf]
    %v380 = vld [vmem:[#allocation8 + $0xa8] sm:$0xff]
    %v381 = vld [vmem:[#allocation8 + $0xb0] sm:$0xf]
    %v382 = vld [vmem:[#allocation8 + $0xb4] sm:$0xff]
    %v383 = vld [vmem:[#allocation8 + $0xbc] sm:$0xf]
    %v416 = vunpack.c.l.b16 %v352
    %v417 = vunpack.c.h.b16 %v352
    %v418 = vunpack.c.l.b16 %v353
    %v419 = vunpack.c.l.b16 %v354
    %v420 = vunpack.c.h.b16 %v354
    %v421 = vunpack.c.l.b16 %v355
    %v422 = vunpack.c.l.b16 %v356
    %v423 = vunpack.c.h.b16 %v356
    %v424 = vunpack.c.l.b16 %v357
    %v425 = vunpack.c.l.b16 %v358
    %v426 = vunpack.c.h.b16 %v358
    %v427 = vunpack.c.l.b16 %v359
    %v428 = vunpack.c.l.b16 %v360
    %v429 = vunpack.c.h.b16 %v360
    %v430 = vunpack.c.l.b16 %v361
    %v431 = vunpack.c.l.b16 %v362
    %v432 = vunpack.c.h.b16 %v362
    %v433 = vunpack.c.l.b16 %v363
    %v434 = vunpack.c.l.b16 %v364
    %v435 = vunpack.c.h.b16 %v364
    %v436 = vunpack.c.l.b16 %v365
    %v437 = vunpack.c.l.b16 %v366
    %v438 = vunpack.c.h.b16 %v366
    %v439 = vunpack.c.l.b16 %v367
    %v440 = vunpack.c.l.b16 %v368
    %v441 = vunpack.c.h.b16 %v368
    %v442 = vunpack.c.l.b16 %v369
    %v443 = vunpack.c.l.b16 %v370
    %v444 = vunpack.c.h.b16 %v370
    %v445 = vunpack.c.l.b16 %v371
    %v446 = vunpack.c.l.b16 %v372
    %v447 = vunpack.c.h.b16 %v372
    %v448 = vunpack.c.l.b16 %v373
    %v449 = vunpack.c.l.b16 %v374
    %v450 = vunpack.c.h.b16 %v374
    %v451 = vunpack.c.l.b16 %v375
    %v452 = vunpack.c.l.b16 %v376
    %v453 = vunpack.c.h.b16 %v376
    %v454 = vunpack.c.l.b16 %v377
    %v455 = vunpack.c.l.b16 %v378
    %v456 = vunpack.c.h.b16 %v378
    %v457 = vunpack.c.l.b16 %v379
    %v458 = vunpack.c.l.b16 %v380
    %v459 = vunpack.c.h.b16 %v380
    %v460 = vunpack.c.l.b16 %v381
    %v461 = vunpack.c.l.b16 %v382
    %v462 = vunpack.c.h.b16 %v382
    %v463 = vunpack.c.l.b16 %v383
    %v464 = vpack.c.b16 %v419, %v416
    %v465 = vpack.c.b16 %v420, %v417
    %v466 = vpack.c.b16 %v421, %v418
    %v467 = vpack.c.b16 %v425, %v422
    %v468 = vpack.c.b16 %v426, %v423
    %v469 = vpack.c.b16 %v427, %v424
    %v470 = vpack.c.b16 %v431, %v428
    %v471 = vpack.c.b16 %v432, %v429
    %v472 = vpack.c.b16 %v433, %v430
    %v473 = vpack.c.b16 %v437, %v434
    %v474 = vpack.c.b16 %v438, %v435
    %v475 = vpack.c.b16 %v439, %v436
    %v476 = vpack.c.b16 %v443, %v440
    %v477 = vpack.c.b16 %v444, %v441
    %v478 = vpack.c.b16 %v445, %v442
    %v479 = vpack.c.b16 %v449, %v446
    %v480 = vpack.c.b16 %v450, %v447
    %v481 = vpack.c.b16 %v451, %v448
    %v482 = vpack.c.b16 %v455, %v452
    %v483 = vpack.c.b16 %v456, %v453
    %v484 = vpack.c.b16 %v457, %v454
    %v485 = vpack.c.b16 %v461, %v458
    %v486 = vpack.c.b16 %v462, %v459
    %v487 = vpack.c.b16 %v463, %v460
    %512 = vmatprep.subr.bf16.mxu0 %v465
    %513 = vmatpush1.bf16.msra.mxu0 %v464
    %514 = vmatprep.subr.bf16.mxu0 %v468
    %515 = vmatpush1.bf16.msra.mxu0 %v467
    %516 = vmatprep.subr.bf16.mxu0 %v471
    %517 = vmatpush1.bf16.msra.mxu0 %v470
    %518 = vmatprep.subr.bf16.mxu0 %v474
    %519 = vmatpush1.bf16.msra.mxu0 %v473
    %520 = vmatprep.subr.bf16.mxu0 %v477
    %521 = vmatpush1.bf16.msra.mxu0 %v476
    %522 = vmatprep.subr.bf16.mxu0 %v480
    %523 = vmatpush1.bf16.msra.mxu0 %v479
    %524 = vmatprep.subr.bf16.mxu0 %v483
    %525 = vmatpush1.bf16.msra.mxu0 %v482
    %526 = vmatprep.subr.bf16.mxu0 %v486
    %527 = vmatpush1.bf16.msra.mxu0 %v485
    %528 = vmatprep.subr.bf16.mxu0 0
    %529 = vmatpush1.bf16.msra.mxu0 0
    %530 = vmatprep.subr.bf16.mxu0 0
    %531 = vmatpush1.bf16.msra.mxu0 0
    %532 = vmatprep.subr.bf16.mxu0 0
    %533 = vmatpush1.bf16.msra.mxu0 0
    %534 = vmatprep.subr.bf16.mxu0 0
    %535 = vmatpush1.bf16.msra.mxu0 0
    %536 = vmatprep.subr.bf16.mxu0 0
    %537 = vmatpush1.bf16.msra.mxu0 0
    %538 = vmatprep.subr.bf16.mxu0 0
    %539 = vmatpush1.bf16.msra.mxu0 0
    %540 = vmatprep.subr.bf16.mxu0 0
    %541 = vmatpush1.bf16.msra.mxu0 0
    %542 = vmatprep.subr.bf16.mxu0 0
    %543 = vmatpush1.bf16.msra.mxu0 0
    %544 = vmatprep.mubr.bf16.mxu0 0
    %545 = vmatmul.mubr.bf16.gmra.mrb[0].mxu0 %v351
    %v546 = vpop.f32.mrb[0].mxu0
    %v547 = vadd.f32 0.0, %v546
    %v548 = vpop.f32.mrb[0].mxu0
    %v549 = vadd.f32 0.0, %v548
    %v550 = vpop.f32.mrb[0].mxu0
    %v551 = vadd.f32 0.0, %v550
    %v552 = vpop.f32.mrb[0].mxu0
    %v553 = vadd.f32 0.0, %v552
    %554 = vdwg.mxu0
    %555 = vmatprep.subr.bf16.mxu0 0
    %556 = vmatpush1.bf16.msra.mxu0 %v466
    %557 = vmatprep.subr.bf16.mxu0 0
    %558 = vmatpush1.bf16.msra.mxu0 %v469
    %559 = vmatprep.subr.bf16.mxu0 0
    %560 = vmatpush1.bf16.msra.mxu0 %v472
    %561 = vmatprep.subr.bf16.mxu0 0
    %562 = vmatpush1.bf16.msra.mxu0 %v475
    %563 = vmatprep.subr.bf16.mxu0 0
    %564 = vmatpush1.bf16.msra.mxu0 %v478
    %565 = vmatprep.subr.bf16.mxu0 0
    %566 = vmatpush1.bf16.msra.mxu0 %v481
    %567 = vmatprep.subr.bf16.mxu0 0
    %568 = vmatpush1.bf16.msra.mxu0 %v484
    %569 = vmatprep.subr.bf16.mxu0 0
    %570 = vmatpush1.bf16.msra.mxu0 %v487
    %571 = vmatprep.subr.bf16.mxu0 0
    %572 = vmatpush1.bf16.msra.mxu0 0
    %573 = vmatprep.subr.bf16.mxu0 0
    %574 = vmatpush1.bf16.msra.mxu0 0
    %575 = vmatprep.subr.bf16.mxu0 0
    %576 = vmatpush1.bf16.msra.mxu0 0
    %577 = vmatprep.subr.bf16.mxu0 0
    %578 = vmatpush1.bf16.msra.mxu0 0
    %579 = vmatprep.subr.bf16.mxu0 0
    %580 = vmatpush1.bf16.msra.mxu0 0
    %581 = vmatprep.subr.bf16.mxu0 0
    %582 = vmatpush1.bf16.msra.mxu0 0
    %583 = vmatprep.subr.bf16.mxu0 0
    %584 = vmatpush1.bf16.msra.mxu0 0
    %585 = vmatprep.subr.bf16.mxu0 0
    %586 = vmatpush1.bf16.msra.mxu0 0
    %587 = vmatprep.mubr.bf16.mxu0 0
    %588 = vmatmul.mubr.bf16.gmra.mrb[0].mxu0 %v351
    %v589 = vpop.f32.mrb[0].mxu0
    %v590 = vadd.f32 0.0, %v589
    %v591 = vpop.f32.mrb[0].mxu0
    %v592 = vpop.f32.mrb[0].mxu0
    %v593 = vadd.f32 0.0, %v592
    %v594 = vpop.f32.mrb[0].mxu0
    %595 = vdwg.mxu0
    %v596 = vlaneseq
    %v597 = vshrl.u32 %v596, 7
    %v598 = vsub.s32 6, %v597
    %v599 = vrot.slane %v90, %v598
    %v600 = vadd.f32 %v547, %v599
    %v601 = vadd.f32 %v551, %v599
    %v602 = vpack.c.bf16 %v601, %v600
    %v603 = vlaneseq
    %v604 = vshrl.u32 %v603, 7
    %v605 = vsub.s32 7, %v604
    %v606 = vrot.slane %v90, %v605
    %v607 = vadd.f32 %v549, %v606
    %v608 = vadd.f32 %v553, %v606
    %v609 = vpack.c.bf16 %v608, %v607
    %v610 = vlaneseq
    %v611 = vshrl.u32 %v610, 7
    %v612 = vsub.s32 0, %v611
    %v613 = vrot.slane %v91, %v612
    %v614 = vadd.f32 %v590, %v613
    %v615 = vadd.f32 %v593, %v613
    %v616 = vpack.c.bf16 %v615, %v614
    %v618 = vunpack.c.l.b16 %v602
    %v619 = vunpack.c.h.b16 %v602
    %v620 = vpack.c.b16 %v618, %v618
    %v621 = vpack.c.b16 %v619, %v619
    %v625 = vunpack.c.l.b16 %v609
    %v626 = vunpack.c.h.b16 %v609
    %v627 = vpack.c.b16 %v625, %v625
    %v628 = vpack.c.b16 %v626, %v626
    %v632 = vunpack.c.l.b16 %v616
    %v633 = vunpack.c.h.b16 %v616
    %v634 = vpack.c.b16 %v632, %v632
    %v635 = vpack.c.b16 %v633, %v633
    %636 = vmatprep.subr.bf16.mxu0 0
    %637 = vmatpush1.bf16.xpose.msra.mxu0 %v627
    %638 = vmatprep.subr.bf16.mxu0 0
    %639 = vmatpush1.bf16.xpose.msra.mxu0 0
    %640 = vmatprep.subr.bf16.mxu0 0
    %641 = vmatpush1.bf16.xpose.msra.mxu0 0
    %642 = vmatprep.subr.bf16.mxu0 0
    %643 = vmatpush1.bf16.xpose.msra.mxu0 0
    %644 = vmatprep.subr.bf16.mxu0 0
    %645 = vmatpush1.bf16.xpose.msra.mxu0 0
    %646 = vmatprep.subr.bf16.mxu0 0
    %647 = vmatpush1.bf16.xpose.msra.mxu0 0
    %648 = vmatprep.subr.bf16.mxu0 0
    %649 = vmatpush1.bf16.xpose.msra.mxu0 0
    %650 = vmatprep.subr.bf16.mxu0 0
    %651 = vmatpush1.bf16.xpose.msra.mxu0 0
    %652 = vmatprep.subr.bf16.mxu0 0
    %653 = vmatpush1.bf16.xpose.msra.mxu0 0
    %654 = vmatprep.subr.bf16.mxu0 0
    %655 = vmatpush1.bf16.xpose.msra.mxu0 0
    %656 = vmatprep.subr.bf16.mxu0 0
    %657 = vmatpush1.bf16.xpose.msra.mxu0 0
    %658 = vmatprep.subr.bf16.mxu0 0
    %659 = vmatpush1.bf16.xpose.msra.mxu0 0
    %660 = vmatprep.subr.bf16.mxu0 0
    %661 = vmatpush1.bf16.xpose.msra.mxu0 0
    %662 = vmatprep.subr.bf16.mxu0 0
    %663 = vmatpush1.bf16.xpose.msra.mxu0 0
    %664 = vmatprep.subr.bf16.mxu0 0
    %665 = vmatpush1.bf16.xpose.msra.mxu0 0
    %666 = vmatprep.subr.bf16.mxu0 0
    %667 = vmatpush1.bf16.xpose.msra.mxu0 0
    %668 = vmatprep.mubr.bf16.mxu0 0
    %669 = vmatmul.mubr.bf16.gmra.mrb[0].mxu0 %v620
    %v670 = vpop.f32.mrb[0].mxu0
    %v671 = vadd.f32 0.0, %v670
    %v672 = vpop.f32.mrb[0].mxu0
    %v673 = vpop.f32.mrb[0].mxu0
    %v674 = vpop.f32.mrb[0].mxu0
    %675 = vdwg.mxu0
    %676 = vmatprep.subr.bf16.mxu0 0
    %677 = vmatpush1.bf16.xpose.msra.mxu0 %v628
    %678 = vmatprep.subr.bf16.mxu0 0
    %679 = vmatpush1.bf16.xpose.msra.mxu0 0
    %680 = vmatprep.subr.bf16.mxu0 0
    %681 = vmatpush1.bf16.xpose.msra.mxu0 0
    %682 = vmatprep.subr.bf16.mxu0 0
    %683 = vmatpush1.bf16.xpose.msra.mxu0 0
    %684 = vmatprep.subr.bf16.mxu0 0
    %685 = vmatpush1.bf16.xpose.msra.mxu0 0
    %686 = vmatprep.subr.bf16.mxu0 0
    %687 = vmatpush1.bf16.xpose.msra.mxu0 0
    %688 = vmatprep.subr.bf16.mxu0 0
    %689 = vmatpush1.bf16.xpose.msra.mxu0 0
    %690 = vmatprep.subr.bf16.mxu0 0
    %691 = vmatpush1.bf16.xpose.msra.mxu0 0
    %692 = vmatprep.subr.bf16.mxu0 0
    %693 = vmatpush1.bf16.xpose.msra.mxu0 0
    %694 = vmatprep.subr.bf16.mxu0 0
    %695 = vmatpush1.bf16.xpose.msra.mxu0 0
    %696 = vmatprep.subr.bf16.mxu0 0
    %697 = vmatpush1.bf16.xpose.msra.mxu0 0
    %698 = vmatprep.subr.bf16.mxu0 0
    %699 = vmatpush1.bf16.xpose.msra.mxu0 0
    %700 = vmatprep.subr.bf16.mxu0 0
    %701 = vmatpush1.bf16.xpose.msra.mxu0 0
    %702 = vmatprep.subr.bf16.mxu0 0
    %703 = vmatpush1.bf16.xpose.msra.mxu0 0
    %704 = vmatprep.subr.bf16.mxu0 0
    %705 = vmatpush1.bf16.xpose.msra.mxu0 0
    %706 = vmatprep.subr.bf16.mxu0 0
    %707 = vmatpush1.bf16.xpose.msra.mxu0 0
    %708 = vmatprep.mubr.bf16.mxu0 0
    %709 = vmatmul.mubr.bf16.gmra.mrb[0].mxu0 %v621
    %v710 = vpop.f32.mrb[0].mxu0
    %v711 = vadd.f32 0.0, %v710
    %v712 = vpop.f32.mrb[0].mxu0
    %v713 = vpop.f32.mrb[0].mxu0
    %v714 = vpop.f32.mrb[0].mxu0
    %715 = vdwg.mxu0
    %v716 = vmul.f32 %v671, 0.17677669
    %v717 = vmul.f32 %v711, 0.17677669
    %vm718 = vcmask 64512
    %v719 = vsel %vm718, %v716, -inf
    %720 = vmax.xlane.f32.xlu0 %v719
    %v721 = vpop.xlane.xlu0 %720
    %v722 = vsel %vm718, %v717, -inf
    %723 = vmax.xlane.f32.xlu0 %v722
    %v724 = vpop.xlane.xlu0 %723
    %v725 = vsub.f32 %v716, %v721
    %v726 = vsub.f32 %v717, %v724
    %v727 = vmul.f32 %v725, 1.442695
    %v728 = vpow.pop %v727
    %v729 = vmul.f32 %v726, 1.442695
    %v730 = vpow.pop %v729
    %v731 = vsel %vm718, %v728, 0.0
    %732 = vadd.xlane.f32.xlu0 %v731
    %v733 = vpop.xlane.xlu0 %732
    %v734 = vsel %vm718, %v730, 0.0
    %735 = vadd.xlane.f32.xlu0 %v734
    %v736 = vpop.xlane.xlu0 %735
    %v737 = vrcp.pop %v733
    %v738 = vrcp.pop %v736
    %v739 = vmul.f32 %v728, %v737
    %v740 = vmul.f32 %v730, %v738
    %v741 = vpack.c.bf16 %v739, %v739
    %v742 = vpack.c.bf16 %v740, %v740
    %v744 = vsel %vm718, %v741, 0
    %vm746 = vcmask 1043456
    %v748 = vsel %vm746, %v634, 0
    %750 = vmatprep.subr.bf16.mxu0 0
    %751 = vmatpush1.bf16.msra.mxu0 %v748
    %752 = vmatprep.subr.bf16.mxu0 0
    %753 = vmatpush1.bf16.msra.mxu0 0
    %754 = vmatprep.subr.bf16.mxu0 0
    %755 = vmatpush1.bf16.msra.mxu0 0
    %756 = vmatprep.subr.bf16.mxu0 0
    %757 = vmatpush1.bf16.msra.mxu0 0
    %758 = vmatprep.subr.bf16.mxu0 0
    %759 = vmatpush1.bf16.msra.mxu0 0
    %760 = vmatprep.subr.bf16.mxu0 0
    %761 = vmatpush1.bf16.msra.mxu0 0
    %762 = vmatprep.subr.bf16.mxu0 0
    %763 = vmatpush1.bf16.msra.mxu0 0
    %764 = vmatprep.subr.bf16.mxu0 0
    %765 = vmatpush1.bf16.msra.mxu0 0
    %766 = vmatprep.subr.bf16.mxu0 0
    %767 = vmatpush1.bf16.msra.mxu0 0
    %768 = vmatprep.subr.bf16.mxu0 0
    %769 = vmatpush1.bf16.msra.mxu0 0
    %770 = vmatprep.subr.bf16.mxu0 0
    %771 = vmatpush1.bf16.msra.mxu0 0
    %772 = vmatprep.subr.bf16.mxu0 0
    %773 = vmatpush1.bf16.msra.mxu0 0
    %774 = vmatprep.subr.bf16.mxu0 0
    %775 = vmatpush1.bf16.msra.mxu0 0
    %776 = vmatprep.subr.bf16.mxu0 0
    %777 = vmatpush1.bf16.msra.mxu0 0
    %778 = vmatprep.subr.bf16.mxu0 0
    %779 = vmatpush1.bf16.msra.mxu0 0
    %780 = vmatprep.subr.bf16.mxu0 0
    %781 = vmatpush1.bf16.msra.mxu0 0
    %782 = vmatprep.mubr.bf16.mxu0 0
    %783 = vmatmul.mubr.bf16.gmra.mrb[0].mxu0 %v744
    %v784 = vpop.f32.mrb[0].mxu0
    %v785 = vadd.f32 0.0, %v784
    %v786 = vpop.f32.mrb[0].mxu0
    %v787 = vpop.f32.mrb[0].mxu0
    %v788 = vpop.f32.mrb[0].mxu0
    %789 = vdwg.mxu0
    %v791 = vsel %vm718, %v742, 0
    %v794 = vsel %vm746, %v635, 0
    %796 = vmatprep.subr.bf16.mxu0 0
    %797 = vmatpush1.bf16.msra.mxu0 %v794
    %798 = vmatprep.subr.bf16.mxu0 0
    %799 = vmatpush1.bf16.msra.mxu0 0
    %800 = vmatprep.subr.bf16.mxu0 0
    %801 = vmatpush1.bf16.msra.mxu0 0
    %802 = vmatprep.subr.bf16.mxu0 0
    %803 = vmatpush1.bf16.msra.mxu0 0
    %804 = vmatprep.subr.bf16.mxu0 0
    %805 = vmatpush1.bf16.msra.mxu0 0
    %806 = vmatprep.subr.bf16.mxu0 0
    %807 = vmatpush1.bf16.msra.mxu0 0
    %808 = vmatprep.subr.bf16.mxu0 0
    %809 = vmatpush1.bf16.msra.mxu0 0
    %810 = vmatprep.subr.bf16.mxu0 0
    %811 = vmatpush1.bf16.msra.mxu0 0
    %812 = vmatprep.subr.bf16.mxu0 0
    %813 = vmatpush1.bf16.msra.mxu0 0
    %814 = vmatprep.subr.bf16.mxu0 0
    %815 = vmatpush1.bf16.msra.mxu0 0
    %816 = vmatprep.subr.bf16.mxu0 0
    %817 = vmatpush1.bf16.msra.mxu0 0
    %818 = vmatprep.subr.bf16.mxu0 0
    %819 = vmatpush1.bf16.msra.mxu0 0
    %820 = vmatprep.subr.bf16.mxu0 0
    %821 = vmatpush1.bf16.msra.mxu0 0
    %822 = vmatprep.subr.bf16.mxu0 0
    %823 = vmatpush1.bf16.msra.mxu0 0
    %824 = vmatprep.subr.bf16.mxu0 0
    %825 = vmatpush1.bf16.msra.mxu0 0
    %826 = vmatprep.subr.bf16.mxu0 0
    %827 = vmatpush1.bf16.msra.mxu0 0
    %828 = vmatprep.mubr.bf16.mxu0 0
    %829 = vmatmul.mubr.bf16.gmra.mrb[0].mxu0 %v791
    %v830 = vpop.f32.mrb[0].mxu0
    %v831 = vadd.f32 0.0, %v830
    %v832 = vpop.f32.mrb[0].mxu0
    %v833 = vpop.f32.mrb[0].mxu0
    %v834 = vpop.f32.mrb[0].mxu0
    %835 = vdwg.mxu0
    %v836 = vpack.c.bf16 %v831, %v785
    %s837 = scalar_lea.vmem [#allocation7], 64
    %v838 = vld [vmem:[%s837] sm:$0xf]
    %v839 = vld [vmem:[%s837 + $0x4] sm:$0xf]
    %v840 = vld [vmem:[%s837 + $0x8] sm:$0xf]
    %v841 = vld [vmem:[%s837 + $0xc] sm:$0xf]
    %v842 = vld [vmem:[%s837 + $0x10] sm:$0xf]
    %v843 = vld [vmem:[%s837 + $0x14] sm:$0xf]
    %v844 = vld [vmem:[%s837 + $0x18] sm:$0xf]
    %v845 = vld [vmem:[%s837 + $0x1c] sm:$0xf]
    %v846 = vld [vmem:[%s837 + $0x20] sm:$0xf]
    %v847 = vld [vmem:[%s837 + $0x24] sm:$0xf]
    %v848 = vld [vmem:[%s837 + $0x28] sm:$0xf]
    %v849 = vld [vmem:[%s837 + $0x2c] sm:$0xf]
    %v850 = vld [vmem:[%s837 + $0x30] sm:$0xf]
    %v851 = vld [vmem:[%s837 + $0x34] sm:$0xf]
    %v852 = vld [vmem:[%s837 + $0x38] sm:$0xf]
    %v853 = vld [vmem:[%s837 + $0x3c] sm:$0xf]
    %v854 = vlaneseq
    %v855 = vshrl.u32 %v854, 7
    %v856 = vsub.s32 1, %v855
    %v857 = vrot.slane %v91, %v856
    %v874 = vunpack.c.l.b16 %v838
    %v875 = vunpack.c.l.b16 %v839
    %v876 = vunpack.c.l.b16 %v840
    %v877 = vunpack.c.l.b16 %v841
    %v878 = vunpack.c.l.b16 %v842
    %v879 = vunpack.c.l.b16 %v843
    %v880 = vunpack.c.l.b16 %v844
    %v881 = vunpack.c.l.b16 %v845
    %v882 = vunpack.c.l.b16 %v846
    %v883 = vunpack.c.l.b16 %v847
    %v884 = vunpack.c.l.b16 %v848
    %v885 = vunpack.c.l.b16 %v849
    %v886 = vunpack.c.l.b16 %v850
    %v887 = vunpack.c.l.b16 %v851
    %v888 = vunpack.c.l.b16 %v852
    %v889 = vunpack.c.l.b16 %v853
    %v890 = vpack.c.b16 %v875, %v874
    %v891 = vpack.c.b16 %v877, %v876
    %v892 = vpack.c.b16 %v879, %v878
    %v893 = vpack.c.b16 %v881, %v880
    %v894 = vpack.c.b16 %v883, %v882
    %v895 = vpack.c.b16 %v885, %v884
    %v896 = vpack.c.b16 %v887, %v886
    %v897 = vpack.c.b16 %v889, %v888
    %906 = vmatprep.subr.bf16.mxu0 0
    %907 = vmatpush1.bf16.msra.mxu0 %v890
    %908 = vmatprep.subr.bf16.mxu0 0
    %909 = vmatpush1.bf16.msra.mxu0 %v891
    %910 = vmatprep.subr.bf16.mxu0 0
    %911 = vmatpush1.bf16.msra.mxu0 %v892
    %912 = vmatprep.subr.bf16.mxu0 0
    %913 = vmatpush1.bf16.msra.mxu0 %v893
    %914 = vmatprep.subr.bf16.mxu0 0
    %915 = vmatpush1.bf16.msra.mxu0 %v894
    %916 = vmatprep.subr.bf16.mxu0 0
    %917 = vmatpush1.bf16.msra.mxu0 %v895
    %918 = vmatprep.subr.bf16.mxu0 0
    %919 = vmatpush1.bf16.msra.mxu0 %v896
    %920 = vmatprep.subr.bf16.mxu0 0
    %921 = vmatpush1.bf16.msra.mxu0 %v897
    %922 = vmatprep.subr.bf16.mxu0 0
    %923 = vmatpush1.bf16.msra.mxu0 0
    %924 = vmatprep.subr.bf16.mxu0 0
    %925 = vmatpush1.bf16.msra.mxu0 0
    %926 = vmatprep.subr.bf16.mxu0 0
    %927 = vmatpush1.bf16.msra.mxu0 0
    %928 = vmatprep.subr.bf16.mxu0 0
    %929 = vmatpush1.bf16.msra.mxu0 0
    %930 = vmatprep.subr.bf16.mxu0 0
    %931 = vmatpush1.bf16.msra.mxu0 0
    %932 = vmatprep.subr.bf16.mxu0 0
    %933 = vmatpush1.bf16.msra.mxu0 0
    %934 = vmatprep.subr.bf16.mxu0 0
    %935 = vmatpush1.bf16.msra.mxu0 0
    %936 = vmatprep.subr.bf16.mxu0 0
    %937 = vmatpush1.bf16.msra.mxu0 0
    %938 = vmatprep.mubr.bf16.mxu0 0
    %939 = vmatmul.mubr.bf16.gmra.mrb[0].mxu0 %v836
    %v940 = vpop.f32.mrb[0].mxu0
    %v941 = vadd.f32 %v857, %v940
    %v942 = vpop.f32.mrb[0].mxu0
    %v943 = vpop.f32.mrb[0].mxu0
    %v944 = vadd.f32 %v857, %v943
    %v945 = vpop.f32.mrb[0].mxu0
    %946 = vdwg.mxu0
    %v947 = vunpack.c.l.bf16 %v351
    %v948 = vunpack.c.h.bf16 %v351
    %v949 = vadd.f32 %v947, %v941
    %v950 = vadd.f32 %v948, %v944
    %v951 = vpack.c.bf16 %v950, %v949
    %s952 = scalar_lea.vmem [#allocation7], 128
    %v953 = vld [vmem:[%s952] sm:$0xf]
    %v954 = vld [vmem:[%s952 + $0x4] sm:$0xf]
    %v955 = vld [vmem:[%s952 + $0x8] sm:$0xf]
    %v956 = vld [vmem:[%s952 + $0xc] sm:$0xf]
    %v957 = vld [vmem:[%s952 + $0x10] sm:$0xf]
    %v958 = vld [vmem:[%s952 + $0x14] sm:$0xf]
    %v959 = vld [vmem:[%s952 + $0x18] sm:$0xf]
    %v960 = vld [vmem:[%s952 + $0x1c] sm:$0xf]
    %v961 = vld [vmem:[%s952 + $0x20] sm:$0xf]
    %v962 = vld [vmem:[%s952 + $0x24] sm:$0xf]
    %v963 = vld [vmem:[%s952 + $0x28] sm:$0xf]
    %v964 = vld [vmem:[%s952 + $0x2c] sm:$0xf]
    %v965 = vld [vmem:[%s952 + $0x30] sm:$0xf]
    %v966 = vld [vmem:[%s952 + $0x34] sm:$0xf]
    %v967 = vld [vmem:[%s952 + $0x38] sm:$0xf]
    %v968 = vld [vmem:[%s952 + $0x3c] sm:$0xf]
    %v969 = vlaneseq
    %v970 = vshrl.u32 %v969, 7
    %v971 = vsub.s32 2, %v970
    %v972 = vrot.slane %v91, %v971
    %v989 = vunpack.c.l.b16 %v953
    %v990 = vunpack.c.l.b16 %v954
    %v991 = vunpack.c.l.b16 %v955
    %v992 = vunpack.c.l.b16 %v956
    %v993 = vunpack.c.l.b16 %v957
    %v994 = vunpack.c.l.b16 %v958
    %v995 = vunpack.c.l.b16 %v959
    %v996 = vunpack.c.l.b16 %v960
    %v997 = vunpack.c.l.b16 %v961
    %v998 = vunpack.c.l.b16 %v962
    %v999 = vunpack.c.l.b16 %v963
    %v1000 = vunpack.c.l.b16 %v964
    %v1001 = vunpack.c.l.b16 %v965
    %v1002 = vunpack.c.l.b16 %v966
    %v1003 = vunpack.c.l.b16 %v967
    %v1004 = vunpack.c.l.b16 %v968
    %v1005 = vpack.c.b16 %v990, %v989
    %v1006 = vpack.c.b16 %v992, %v991
    %v1007 = vpack.c.b16 %v994, %v993
    %v1008 = vpack.c.b16 %v996, %v995
    %v1009 = vpack.c.b16 %v998, %v997
    %v1010 = vpack.c.b16 %v1000, %v999
    %v1011 = vpack.c.b16 %v1002, %v1001
    %v1012 = vpack.c.b16 %v1004, %v1003
    %1021 = vmatprep.subr.bf16.mxu0 0
    %1022 = vmatpush1.bf16.msra.mxu0 %v1005
    %1023 = vmatprep.subr.bf16.mxu0 0
    %1024 = vmatpush1.bf16.msra.mxu0 %v1006
    %1025 = vmatprep.subr.bf16.mxu0 0
    %1026 = vmatpush1.bf16.msra.mxu0 %v1007
    %1027 = vmatprep.subr.bf16.mxu0 0
    %1028 = vmatpush1.bf16.msra.mxu0 %v1008
    %1029 = vmatprep.subr.bf16.mxu0 0
    %1030 = vmatpush1.bf16.msra.mxu0 %v1009
    %1031 = vmatprep.subr.bf16.mxu0 0
    %1032 = vmatpush1.bf16.msra.mxu0 %v1010
    %1033 = vmatprep.subr.bf16.mxu0 0
    %1034 = vmatpush1.bf16.msra.mxu0 %v1011
    %1035 = vmatprep.subr.bf16.mxu0 0
    %1036 = vmatpush1.bf16.msra.mxu0 %v1012
    %1037 = vmatprep.subr.bf16.mxu0 0
    %1038 = vmatpush1.bf16.msra.mxu0 0
    %1039 = vmatprep.subr.bf16.mxu0 0
    %1040 = vmatpush1.bf16.msra.mxu0 0
    %1041 = vmatprep.subr.bf16.mxu0 0
    %1042 = vmatpush1.bf16.msra.mxu0 0
    %1043 = vmatprep.subr.bf16.mxu0 0
    %1044 = vmatpush1.bf16.msra.mxu0 0
    %1045 = vmatprep.subr.bf16.mxu0 0
    %1046 = vmatpush1.bf16.msra.mxu0 0
    %1047 = vmatprep.subr.bf16.mxu0 0
    %1048 = vmatpush1.bf16.msra.mxu0 0
    %1049 = vmatprep.subr.bf16.mxu0 0
    %1050 = vmatpush1.bf16.msra.mxu0 0
    %1051 = vmatprep.subr.bf16.mxu0 0
    %1052 = vmatpush1.bf16.msra.mxu0 0
    %1053 = vmatprep.mubr.bf16.mxu0 0
    %1054 = vmatmul.mubr.bf16.gmra.mrb[0].mxu0 %v951
    %v1055 = vpop.f32.mrb[0].mxu0
    %v1056 = vadd.f32 %v972, %v1055
    %v1057 = vpop.f32.mrb[0].mxu0
    %v1058 = vpop.f32.mrb[0].mxu0
    %v1059 = vadd.f32 %v972, %v1058
    %v1060 = vpop.f32.mrb[0].mxu0
    %1061 = vdwg.mxu0
    %1062 = vadd.xlane.f32.xlu0 %v1056
    %v1063 = vpop.xlane.xlu0 %1062
    %1064 = vadd.xlane.f32.xlu0 %v1059
    %v1065 = vpop.xlane.xlu0 %1064
    %v1066 = vmul.f32 %v1063, 0.0625
    %v1067 = vmul.f32 %v1065, 0.0625
    %v1068 = vsub.f32 %v1056, %v1066
    %v1069 = vsub.f32 %v1059, %v1067
    %v1070 = vmul.f32 %v1068, %v100
    %v1071 = vmul.f32 %v1069, %v100
    %v1072 = vmul.f32 %v1070, %v1070
    %v1073 = vmul.f32 %v1071, %v1071
    %1074 = vadd.xlane.f32.xlu0 %v1072
    %v1075 = vpop.xlane.xlu0 %1074
    %1076 = vadd.xlane.f32.xlu0 %v1073
    %v1077 = vpop.xlane.xlu0 %1076
    %v1078 = vmul.f32 %v1075, 0.0625
    %v1079 = vmul.f32 %v1077, 0.0625
    %v1080 = vadd.f32 %v1078, 1e-05
    %v1081 = vadd.f32 %v1079, 1e-05
    %v1082 = vrsqrt.pop %v1080
    %v1083 = vrsqrt.pop %v1081
    %v1084 = vmul.f32 %v1070, %v1082
    %v1085 = vmul.f32 %v1071, %v1083
    %v1086 = vlaneseq
    %v1087 = vshrl.u32 %v1086, 7
    %v1088 = vsub.s32 3, %v1087
    %v1089 = vrot.slane %v91, %v1088
    %v1090 = vmul.f32 %v1084, %v1089
    %v1091 = vmul.f32 %v1085, %v1089
    %v1092 = vlaneseq
    %v1093 = vshrl.u32 %v1092, 7
    %v1094 = vsub.s32 4, %v1093
    %v1095 = vrot.slane %v91, %v1094
    %v1096 = vadd.f32 %v1090, %v1095
    %v1097 = vadd.f32 %v1091, %v1095
    %v1098 = vmax.f32 %v1096, 0.0
    %v1099 = vmax.f32 %v1097, 0.0
    %v1100 = vpack.c.bf16 %v1099, %v1098
    %s1101 = scalar_lea.vmem [#allocation7], 192
    %v1102 = vld [vmem:[%s1101] sm:$0xf]
    %v1103 = vld [vmem:[%s1101 + $0x4] sm:$0xf]
    %v1104 = vld [vmem:[%s1101 + $0x8] sm:$0xf]
    %v1105 = vld [vmem:[%s1101 + $0xc] sm:$0xf]
    %v1106 = vld [vmem:[%s1101 + $0x10] sm:$0xf]
    %v1107 = vld [vmem:[%s1101 + $0x14] sm:$0xf]
    %v1108 = vld [vmem:[%s1101 + $0x18] sm:$0xf]
    %v1109 = vld [vmem:[%s1101 + $0x1c] sm:$0xf]
    %v1110 = vld [vmem:[%s1101 + $0x20] sm:$0xf]
    %v1111 = vld [vmem:[%s1101 + $0x24] sm:$0xf]
    %v1112 = vld [vmem:[%s1101 + $0x28] sm:$0xf]
    %v1113 = vld [vmem:[%s1101 + $0x2c] sm:$0xf]
    %v1114 = vld [vmem:[%s1101 + $0x30] sm:$0xf]
    %v1115 = vld [vmem:[%s1101 + $0x34] sm:$0xf]
    %v1116 = vld [vmem:[%s1101 + $0x38] sm:$0xf]
    %v1117 = vld [vmem:[%s1101 + $0x3c] sm:$0xf]
    %v1118 = vlaneseq
    %v1119 = vshrl.u32 %v1118, 7
    %v1120 = vsub.s32 5, %v1119
    %v1121 = vrot.slane %v91, %v1120
    %v1138 = vunpack.c.l.b16 %v1102
    %v1139 = vunpack.c.l.b16 %v1103
    %v1140 = vunpack.c.l.b16 %v1104
    %v1141 = vunpack.c.l.b16 %v1105
    %v1142 = vunpack.c.l.b16 %v1106
    %v1143 = vunpack.c.l.b16 %v1107
    %v1144 = vunpack.c.l.b16 %v1108
    %v1145 = vunpack.c.l.b16 %v1109
    %v1146 = vunpack.c.l.b16 %v1110
    %v1147 = vunpack.c.l.b16 %v1111
    %v1148 = vunpack.c.l.b16 %v1112
    %v1149 = vunpack.c.l.b16 %v1113
    %v1150 = vunpack.c.l.b16 %v1114
    %v1151 = vunpack.c.l.b16 %v1115
    %v1152 = vunpack.c.l.b16 %v1116
    %v1153 = vunpack.c.l.b16 %v1117
    %v1154 = vpack.c.b16 %v1139, %v1138
    %v1155 = vpack.c.b16 %v1141, %v1140
    %v1156 = vpack.c.b16 %v1143, %v1142
    %v1157 = vpack.c.b16 %v1145, %v1144
    %v1158 = vpack.c.b16 %v1147, %v1146
    %v1159 = vpack.c.b16 %v1149, %v1148
    %v1160 = vpack.c.b16 %v1151, %v1150
    %v1161 = vpack.c.b16 %v1153, %v1152
    %1170 = vmatprep.subr.bf16.mxu0 0
    %1171 = vmatpush1.bf16.msra.mxu0 %v1154
    %1172 = vmatprep.subr.bf16.mxu0 0
    %1173 = vmatpush1.bf16.msra.mxu0 %v1155
    %1174 = vmatprep.subr.bf16.mxu0 0
    %1175 = vmatpush1.bf16.msra.mxu0 %v1156
    %1176 = vmatprep.subr.bf16.mxu0 0
    %1177 = vmatpush1.bf16.msra.mxu0 %v1157
    %1178 = vmatprep.subr.bf16.mxu0 0
    %1179 = vmatpush1.bf16.msra.mxu0 %v1158
    %1180 = vmatprep.subr.bf16.mxu0 0
    %1181 = vmatpush1.bf16.msra.mxu0 %v1159
    %1182 = vmatprep.subr.bf16.mxu0 0
    %1183 = vmatpush1.bf16.msra.mxu0 %v1160
    %1184 = vmatprep.subr.bf16.mxu0 0
    %1185 = vmatpush1.bf16.msra.mxu0 %v1161
    %1186 = vmatprep.subr.bf16.mxu0 0
    %1187 = vmatpush1.bf16.msra.mxu0 0
    %1188 = vmatprep.subr.bf16.mxu0 0
    %1189 = vmatpush1.bf16.msra.mxu0 0
    %1190 = vmatprep.subr.bf16.mxu0 0
    %1191 = vmatpush1.bf16.msra.mxu0 0
    %1192 = vmatprep.subr.bf16.mxu0 0
    %1193 = vmatpush1.bf16.msra.mxu0 0
    %1194 = vmatprep.subr.bf16.mxu0 0
    %1195 = vmatpush1.bf16.msra.mxu0 0
    %1196 = vmatprep.subr.bf16.mxu0 0
    %1197 = vmatpush1.bf16.msra.mxu0 0
    %1198 = vmatprep.subr.bf16.mxu0 0
    %1199 = vmatpush1.bf16.msra.mxu0 0
    %1200 = vmatprep.subr.bf16.mxu0 0
    %1201 = vmatpush1.bf16.msra.mxu0 0
    %1202 = vmatprep.mubr.bf16.mxu0 0
    %1203 = vmatmul.mubr.bf16.gmra.mrb[0].mxu0 %v1100
    %v1204 = vpop.f32.mrb[0].mxu0
    %v1205 = vadd.f32 %v1121, %v1204
    %v1206 = vpop.f32.mrb[0].mxu0
    %v1207 = vpop.f32.mrb[0].mxu0
    %v1208 = vadd.f32 %v1121, %v1207
    %v1209 = vpop.f32.mrb[0].mxu0
    %1210 = vdwg.mxu0
    %1211 = vadd.xlane.f32.xlu0 %v1205
    %v1212 = vpop.xlane.xlu0 %1211
    %1213 = vadd.xlane.f32.xlu0 %v1208
    %v1214 = vpop.xlane.xlu0 %1213
    %v1215 = vmul.f32 %v1212, 0.0625
    %v1216 = vmul.f32 %v1214, 0.0625
    %v1217 = vsub.f32 %v1205, %v1215
    %v1218 = vsub.f32 %v1208, %v1216
    %v1219 = vmul.f32 %v1217, %v100
    %v1220 = vmul.f32 %v1218, %v100
    %v1221 = vmul.f32 %v1219, %v1219
    %v1222 = vmul.f32 %v1220, %v1220
    %1223 = vadd.xlane.f32.xlu0 %v1221
    %v1224 = vpop.xlane.xlu0 %1223
    %1225 = vadd.xlane.f32.xlu0 %v1222
    %v1226 = vpop.xlane.xlu0 %1225
    %v1227 = vmul.f32 %v1224, 0.0625
    %v1228 = vmul.f32 %v1226, 0.0625
    %v1229 = vadd.f32 %v1227, 1e-05
    %v1230 = vadd.f32 %v1228, 1e-05
    %v1231 = vrsqrt.pop %v1229
    %v1232 = vrsqrt.pop %v1230
    %v1233 = vmul.f32 %v1219, %v1231
    %v1234 = vmul.f32 %v1220, %v1232
    %v1235 = vlaneseq
    %v1236 = vshrl.u32 %v1235, 7
    %v1237 = vsub.s32 6, %v1236
    %v1238 = vrot.slane %v91, %v1237
    %v1239 = vmul.f32 %v1233, %v1238
    %v1240 = vmul.f32 %v1234, %v1238
    %v1241 = vlaneseq
    %v1242 = vshrl.u32 %v1241, 7
    %v1243 = vsub.s32 7, %v1242
    %v1244 = vrot.slane %v91, %v1243
    %v1245 = vadd.f32 %v1239, %v1244
    %v1246 = vadd.f32 %v1240, %v1244
    %v1247 = vmax.f32 %v1245, 0.0
    %v1248 = vmax.f32 %v1246, 0.0
    %v1249 = vpack.c.bf16 %v1248, %v1247
    %v1250 = vadd.bf16 %v1249, %v1100
    %s1251 = scalar_lea.vmem [#allocation7], 256
    %v1252 = vld [vmem:[%s1251] sm:$0xf]
    %v1253 = vld [vmem:[%s1251 + $0x4] sm:$0xf]
    %v1254 = vld [vmem:[%s1251 + $0x8] sm:$0xf]
    %v1255 = vld [vmem:[%s1251 + $0xc] sm:$0xf]
    %v1256 = vld [vmem:[%s1251 + $0x10] sm:$0xf]
    %v1257 = vld [vmem:[%s1251 + $0x14] sm:$0xf]
    %v1258 = vld [vmem:[%s1251 + $0x18] sm:$0xf]
    %v1259 = vld [vmem:[%s1251 + $0x1c] sm:$0xf]
    %v1260 = vld [vmem:[%s1251 + $0x20] sm:$0xf]
    %v1261 = vld [vmem:[%s1251 + $0x24] sm:$0xf]
    %v1262 = vld [vmem:[%s1251 + $0x28] sm:$0xf]
    %v1263 = vld [vmem:[%s1251 + $0x2c] sm:$0xf]
    %v1264 = vld [vmem:[%s1251 + $0x30] sm:$0xf]
    %v1265 = vld [vmem:[%s1251 + $0x34] sm:$0xf]
    %v1266 = vld [vmem:[%s1251 + $0x38] sm:$0xf]
    %v1267 = vld [vmem:[%s1251 + $0x3c] sm:$0xf]
    %v1268 = vlaneseq
    %v1269 = vshrl.u32 %v1268, 7
    %v1270 = vsub.s32 0, %v1269
    %v1271 = vrot.slane %v92, %v1270
    %v1288 = vunpack.c.l.b16 %v1252
    %v1289 = vunpack.c.l.b16 %v1253
    %v1290 = vunpack.c.l.b16 %v1254
    %v1291 = vunpack.c.l.b16 %v1255
    %v1292 = vunpack.c.l.b16 %v1256
    %v1293 = vunpack.c.l.b16 %v1257
    %v1294 = vunpack.c.l.b16 %v1258
    %v1295 = vunpack.c.l.b16 %v1259
    %v1296 = vunpack.c.l.b16 %v1260
    %v1297 = vunpack.c.l.b16 %v1261
    %v1298 = vunpack.c.l.b16 %v1262
    %v1299 = vunpack.c.l.b16 %v1263
    %v1300 = vunpack.c.l.b16 %v1264
    %v1301 = vunpack.c.l.b16 %v1265
    %v1302 = vunpack.c.l.b16 %v1266
    %v1303 = vunpack.c.l.b16 %v1267
    %v1304 = vpack.c.b16 %v1289, %v1288
    %v1305 = vpack.c.b16 %v1291, %v1290
    %v1306 = vpack.c.b16 %v1293, %v1292
    %v1307 = vpack.c.b16 %v1295, %v1294
    %v1308 = vpack.c.b16 %v1297, %v1296
    %v1309 = vpack.c.b16 %v1299, %v1298
    %v1310 = vpack.c.b16 %v1301, %v1300
    %v1311 = vpack.c.b16 %v1303, %v1302
    %1320 = vmatprep.subr.bf16.mxu0 0
    %1321 = vmatpush1.bf16.msra.mxu0 %v1304
    %1322 = vmatprep.subr.bf16.mxu0 0
    %1323 = vmatpush1.bf16.msra.mxu0 %v1305
    %1324 = vmatprep.subr.bf16.mxu0 0
    %1325 = vmatpush1.bf16.msra.mxu0 %v1306
    %1326 = vmatprep.subr.bf16.mxu0 0
    %1327 = vmatpush1.bf16.msra.mxu0 %v1307
    %1328 = vmatprep.subr.bf16.mxu0 0
    %1329 = vmatpush1.bf16.msra.mxu0 %v1308
    %1330 = vmatprep.subr.bf16.mxu0 0
    %1331 = vmatpush1.bf16.msra.mxu0 %v1309
    %1332 = vmatprep.subr.bf16.mxu0 0
    %1333 = vmatpush1.bf16.msra.mxu0 %v1310
    %1334 = vmatprep.subr.bf16.mxu0 0
    %1335 = vmatpush1.bf16.msra.mxu0 %v1311
    %1336 = vmatprep.subr.bf16.mxu0 0
    %1337 = vmatpush1.bf16.msra.mxu0 0
    %1338 = vmatprep.subr.bf16.mxu0 0
    %1339 = vmatpush1.bf16.msra.mxu0 0
    %1340 = vmatprep.subr.bf16.mxu0 0
    %1341 = vmatpush1.bf16.msra.mxu0 0
    %1342 = vmatprep.subr.bf16.mxu0 0
    %1343 = vmatpush1.bf16.msra.mxu0 0
    %1344 = vmatprep.subr.bf16.mxu0 0
    %1345 = vmatpush1.bf16.msra.mxu0 0
    %1346 = vmatprep.subr.bf16.mxu0 0
    %1347 = vmatpush1.bf16.msra.mxu0 0
    %1348 = vmatprep.subr.bf16.mxu0 0
    %1349 = vmatpush1.bf16.msra.mxu0 0
    %1350 = vmatprep.subr.bf16.mxu0 0
    %1351 = vmatpush1.bf16.msra.mxu0 0
    %1352 = vmatprep.mubr.bf16.mxu0 0
    %1353 = vmatmul.mubr.bf16.gmra.mrb[0].mxu0 %v1250
    %v1354 = vpop.f32.mrb[0].mxu0
    %v1355 = vadd.f32 %v1271, %v1354
    %v1356 = vpop.f32.mrb[0].mxu0
    %v1357 = vpop.f32.mrb[0].mxu0
    %v1358 = vadd.f32 %v1271, %v1357
    %v1359 = vpop.f32.mrb[0].mxu0
    %1360 = vdwg.mxu0
    %1361 = vadd.xlane.f32.xlu0 %v1355
    %v1362 = vpop.xlane.xlu0 %1361
    %1363 = vadd.xlane.f32.xlu0 %v1358
    %v1364 = vpop.xlane.xlu0 %1363
    %v1365 = vmul.f32 %v1362, 0.0625
    %v1366 = vmul.f32 %v1364, 0.0625
    %v1367 = vsub.f32 %v1355, %v1365
    %v1368 = vsub.f32 %v1358, %v1366
    %v1369 = vmul.f32 %v1367, %v100
    %v1370 = vmul.f32 %v1368, %v100
    %v1371 = vmul.f32 %v1369, %v1369
    %v1372 = vmul.f32 %v1370, %v1370
    %1373 = vadd.xlane.f32.xlu0 %v1371
    %v1374 = vpop.xlane.xlu0 %1373
    %1375 = vadd.xlane.f32.xlu0 %v1372
    %v1376 = vpop.xlane.xlu0 %1375
    %v1377 = vmul.f32 %v1374, 0.0625
    %v1378 = vmul.f32 %v1376, 0.0625
    %v1379 = vadd.f32 %v1377, 1e-05
    %v1380 = vadd.f32 %v1378, 1e-05
    %v1381 = vrsqrt.pop %v1379
    %v1382 = vrsqrt.pop %v1380
    %v1383 = vmul.f32 %v1369, %v1381
    %v1384 = vmul.f32 %v1370, %v1382
    %v1385 = vlaneseq
    %v1386 = vshrl.u32 %v1385, 7
    %v1387 = vsub.s32 1, %v1386
    %v1388 = vrot.slane %v92, %v1387
    %v1389 = vmul.f32 %v1383, %v1388
    %v1390 = vmul.f32 %v1384, %v1388
    %v1391 = vlaneseq
    %v1392 = vshrl.u32 %v1391, 7
    %v1393 = vsub.s32 2, %v1392
    %v1394 = vrot.slane %v92, %v1393
    %v1395 = vadd.f32 %v1389, %v1394
    %v1396 = vadd.f32 %v1390, %v1394
    %v1397 = vmax.f32 %v1395, 0.0
    %v1398 = vmax.f32 %v1396, 0.0
    %v1399 = vpack.c.bf16 %v1398, %v1397
    %s1400 = scalar_lea.vmem [#allocation7], 320
    %v1401 = vld [vmem:[%s1400] sm:$0xf]
    %v1402 = vld [vmem:[%s1400 + $0x4] sm:$0xf]
    %v1403 = vld [vmem:[%s1400 + $0x8] sm:$0xf]
    %v1404 = vld [vmem:[%s1400 + $0xc] sm:$0xf]
    %v1405 = vld [vmem:[%s1400 + $0x10] sm:$0xf]
    %v1406 = vld [vmem:[%s1400 + $0x14] sm:$0xf]
    %v1407 = vld [vmem:[%s1400 + $0x18] sm:$0xf]
    %v1408 = vld [vmem:[%s1400 + $0x1c] sm:$0xf]
    %v1409 = vld [vmem:[%s1400 + $0x20] sm:$0xf]
    %v1410 = vld [vmem:[%s1400 + $0x24] sm:$0xf]
    %v1411 = vld [vmem:[%s1400 + $0x28] sm:$0xf]
    %v1412 = vld [vmem:[%s1400 + $0x2c] sm:$0xf]
    %v1413 = vld [vmem:[%s1400 + $0x30] sm:$0xf]
    %v1414 = vld [vmem:[%s1400 + $0x34] sm:$0xf]
    %v1415 = vld [vmem:[%s1400 + $0x38] sm:$0xf]
    %v1416 = vld [vmem:[%s1400 + $0x3c] sm:$0xf]
    %v1417 = vlaneseq
    %v1418 = vshrl.u32 %v1417, 7
    %v1419 = vsub.s32 3, %v1418
    %v1420 = vrot.slane %v92, %v1419
    %v1437 = vunpack.c.l.b16 %v1401
    %v1438 = vunpack.c.l.b16 %v1402
    %v1439 = vunpack.c.l.b16 %v1403
    %v1440 = vunpack.c.l.b16 %v1404
    %v1441 = vunpack.c.l.b16 %v1405
    %v1442 = vunpack.c.l.b16 %v1406
    %v1443 = vunpack.c.l.b16 %v1407
    %v1444 = vunpack.c.l.b16 %v1408
    %v1445 = vunpack.c.l.b16 %v1409
    %v1446 = vunpack.c.l.b16 %v1410
    %v1447 = vunpack.c.l.b16 %v1411
    %v1448 = vunpack.c.l.b16 %v1412
    %v1449 = vunpack.c.l.b16 %v1413
    %v1450 = vunpack.c.l.b16 %v1414
    %v1451 = vunpack.c.l.b16 %v1415
    %v1452 = vunpack.c.l.b16 %v1416
    %v1453 = vpack.c.b16 %v1438, %v1437
    %v1454 = vpack.c.b16 %v1440, %v1439
    %v1455 = vpack.c.b16 %v1442, %v1441
    %v1456 = vpack.c.b16 %v1444, %v1443
    %v1457 = vpack.c.b16 %v1446, %v1445
    %v1458 = vpack.c.b16 %v1448, %v1447
    %v1459 = vpack.c.b16 %v1450, %v1449
    %v1460 = vpack.c.b16 %v1452, %v1451
    %1469 = vmatprep.subr.bf16.mxu0 0
    %1470 = vmatpush1.bf16.msra.mxu0 %v1453
    %1471 = vmatprep.subr.bf16.mxu0 0
    %1472 = vmatpush1.bf16.msra.mxu0 %v1454
    %1473 = vmatprep.subr.bf16.mxu0 0
    %1474 = vmatpush1.bf16.msra.mxu0 %v1455
    %1475 = vmatprep.subr.bf16.mxu0 0
    %1476 = vmatpush1.bf16.msra.mxu0 %v1456
    %1477 = vmatprep.subr.bf16.mxu0 0
    %1478 = vmatpush1.bf16.msra.mxu0 %v1457
    %1479 = vmatprep.subr.bf16.mxu0 0
    %1480 = vmatpush1.bf16.msra.mxu0 %v1458
    %1481 = vmatprep.subr.bf16.mxu0 0
    %1482 = vmatpush1.bf16.msra.mxu0 %v1459
    %1483 = vmatprep.subr.bf16.mxu0 0
    %1484 = vmatpush1.bf16.msra.mxu0 %v1460
    %1485 = vmatprep.subr.bf16.mxu0 0
    %1486 = vmatpush1.bf16.msra.mxu0 0
    %1487 = vmatprep.subr.bf16.mxu0 0
    %1488 = vmatpush1.bf16.msra.mxu0 0
    %1489 = vmatprep.subr.bf16.mxu0 0
    %1490 = vmatpush1.bf16.msra.mxu0 0
    %1491 = vmatprep.subr.bf16.mxu0 0
    %1492 = vmatpush1.bf16.msra.mxu0 0
    %1493 = vmatprep.subr.bf16.mxu0 0
    %1494 = vmatpush1.bf16.msra.mxu0 0
    %1495 = vmatprep.subr.bf16.mxu0 0
    %1496 = vmatpush1.bf16.msra.mxu0 0
    %1497 = vmatprep.subr.bf16.mxu0 0
    %1498 = vmatpush1.bf16.msra.mxu0 0
    %1499 = vmatprep.subr.bf16.mxu0 0
    %1500 = vmatpush1.bf16.msra.mxu0 0
    %1501 = vmatprep.mubr.bf16.mxu0 0
    %1502 = vmatmul.mubr.bf16.gmra.mrb[0].mxu0 %v1399
    %v1503 = vpop.f32.mrb[0].mxu0
    %v1504 = vadd.f32 %v1420, %v1503
    %v1505 = vpop.f32.mrb[0].mxu0
    %v1506 = vpop.f32.mrb[0].mxu0
    %v1507 = vadd.f32 %v1420, %v1506
    %v1508 = vpop.f32.mrb[0].mxu0
    %1509 = vdwg.mxu0
    %1510 = vadd.xlane.f32.xlu0 %v1504
    %v1511 = vpop.xlane.xlu0 %1510
    %1512 = vadd.xlane.f32.xlu0 %v1507
    %v1513 = vpop.xlane.xlu0 %1512
    %v1514 = vmul.f32 %v1511, 0.0625
    %v1515 = vmul.f32 %v1513, 0.0625
    %v1516 = vsub.f32 %v1504, %v1514
    %v1517 = vsub.f32 %v1507, %v1515
    %v1518 = vmul.f32 %v1516, %v100
    %v1519 = vmul.f32 %v1517, %v100
    %v1520 = vmul.f32 %v1518, %v1518
    %v1521 = vmul.f32 %v1519, %v1519
    %1522 = vadd.xlane.f32.xlu0 %v1520
    %v1523 = vpop.xlane.xlu0 %1522
    %1524 = vadd.xlane.f32.xlu0 %v1521
    %v1525 = vpop.xlane.xlu0 %1524
    %v1526 = vmul.f32 %v1523, 0.0625
    %v1527 = vmul.f32 %v1525, 0.0625
    %v1528 = vadd.f32 %v1526, 1e-05
    %v1529 = vadd.f32 %v1527, 1e-05
    %v1530 = vrsqrt.pop %v1528
    %v1531 = vrsqrt.pop %v1529
    %v1532 = vmul.f32 %v1518, %v1530
    %v1533 = vmul.f32 %v1519, %v1531
    %v1534 = vlaneseq
    %v1535 = vshrl.u32 %v1534, 7
    %v1536 = vsub.s32 4, %v1535
    %v1537 = vrot.slane %v92, %v1536
    %v1538 = vmul.f32 %v1532, %v1537
    %v1539 = vmul.f32 %v1533, %v1537
    %v1540 = vlaneseq
    %v1541 = vshrl.u32 %v1540, 7
    %v1542 = vsub.s32 5, %v1541
    %v1543 = vrot.slane %v92, %v1542
    %v1544 = vadd.f32 %v1538, %v1543
    %v1545 = vadd.f32 %v1539, %v1543
    %v1546 = vmax.f32 %v1544, 0.0
    %v1547 = vmax.f32 %v1545, 0.0
    %v1548 = vpack.c.bf16 %v1547, %v1546
    %v1549 = vadd.bf16 %v1548, %v1399
    %s1550 = scalar_lea.vmem [#allocation7], 384
    %v1551 = vld [vmem:[%s1550] sm:$0xf]
    %v1552 = vld [vmem:[%s1550 + $0x4] sm:$0xf]
    %v1553 = vld [vmem:[%s1550 + $0x8] sm:$0xf]
    %v1554 = vld [vmem:[%s1550 + $0xc] sm:$0xf]
    %v1555 = vld [vmem:[%s1550 + $0x10] sm:$0xf]
    %v1556 = vld [vmem:[%s1550 + $0x14] sm:$0xf]
    %v1557 = vld [vmem:[%s1550 + $0x18] sm:$0xf]
    %v1558 = vld [vmem:[%s1550 + $0x1c] sm:$0xf]
    %v1559 = vld [vmem:[%s1550 + $0x20] sm:$0xf]
    %v1560 = vld [vmem:[%s1550 + $0x24] sm:$0xf]
    %v1561 = vld [vmem:[%s1550 + $0x28] sm:$0xf]
    %v1562 = vld [vmem:[%s1550 + $0x2c] sm:$0xf]
    %v1563 = vld [vmem:[%s1550 + $0x30] sm:$0xf]
    %v1564 = vld [vmem:[%s1550 + $0x34] sm:$0xf]
    %v1565 = vld [vmem:[%s1550 + $0x38] sm:$0xf]
    %v1566 = vld [vmem:[%s1550 + $0x3c] sm:$0xf]
    %v1567 = vlaneseq
    %v1568 = vshrl.u32 %v1567, 7
    %v1569 = vsub.s32 6, %v1568
    %v1570 = vrot.slane %v92, %v1569
    %v1587 = vunpack.c.l.b16 %v1551
    %v1588 = vunpack.c.l.b16 %v1552
    %v1589 = vunpack.c.l.b16 %v1553
    %v1590 = vunpack.c.l.b16 %v1554
    %v1591 = vunpack.c.l.b16 %v1555
    %v1592 = vunpack.c.l.b16 %v1556
    %v1593 = vunpack.c.l.b16 %v1557
    %v1594 = vunpack.c.l.b16 %v1558
    %v1595 = vunpack.c.l.b16 %v1559
    %v1596 = vunpack.c.l.b16 %v1560
    %v1597 = vunpack.c.l.b16 %v1561
    %v1598 = vunpack.c.l.b16 %v1562
    %v1599 = vunpack.c.l.b16 %v1563
    %v1600 = vunpack.c.l.b16 %v1564
    %v1601 = vunpack.c.l.b16 %v1565
    %v1602 = vunpack.c.l.b16 %v1566
    %v1603 = vpack.c.b16 %v1588, %v1587
    %v1604 = vpack.c.b16 %v1590, %v1589
    %v1605 = vpack.c.b16 %v1592, %v1591
    %v1606 = vpack.c.b16 %v1594, %v1593
    %v1607 = vpack.c.b16 %v1596, %v1595
    %v1608 = vpack.c.b16 %v1598, %v1597
    %v1609 = vpack.c.b16 %v1600, %v1599
    %v1610 = vpack.c.b16 %v1602, %v1601
    %1619 = vmatprep.subr.bf16.mxu0 0
    %1620 = vmatpush1.bf16.msra.mxu0 %v1603
    %1621 = vmatprep.subr.bf16.mxu0 0
    %1622 = vmatpush1.bf16.msra.mxu0 %v1604
    %1623 = vmatprep.subr.bf16.mxu0 0
    %1624 = vmatpush1.bf16.msra.mxu0 %v1605
    %1625 = vmatprep.subr.bf16.mxu0 0
    %1626 = vmatpush1.bf16.msra.mxu0 %v1606
    %1627 = vmatprep.subr.bf16.mxu0 0
    %1628 = vmatpush1.bf16.msra.mxu0 %v1607
    %1629 = vmatprep.subr.bf16.mxu0 0
    %1630 = vmatpush1.bf16.msra.mxu0 %v1608
    %1631 = vmatprep.subr.bf16.mxu0 0
    %1632 = vmatpush1.bf16.msra.mxu0 %v1609
    %1633 = vmatprep.subr.bf16.mxu0 0
    %1634 = vmatpush1.bf16.msra.mxu0 %v1610
    %1635 = vmatprep.subr.bf16.mxu0 0
    %1636 = vmatpush1.bf16.msra.mxu0 0
    %1637 = vmatprep.subr.bf16.mxu0 0
    %1638 = vmatpush1.bf16.msra.mxu0 0
    %1639 = vmatprep.subr.bf16.mxu0 0
    %1640 = vmatpush1.bf16.msra.mxu0 0
    %1641 = vmatprep.subr.bf16.mxu0 0
    %1642 = vmatpush1.bf16.msra.mxu0 0
    %1643 = vmatprep.subr.bf16.mxu0 0
    %1644 = vmatpush1.bf16.msra.mxu0 0
    %1645 = vmatprep.subr.bf16.mxu0 0
    %1646 = vmatpush1.bf16.msra.mxu0 0
    %1647 = vmatprep.subr.bf16.mxu0 0
    %1648 = vmatpush1.bf16.msra.mxu0 0
    %1649 = vmatprep.subr.bf16.mxu0 0
    %1650 = vmatpush1.bf16.msra.mxu0 0
    %1651 = vmatprep.mubr.bf16.mxu0 0
    %1652 = vmatmul.mubr.bf16.gmra.mrb[0].mxu0 %v1549
    %v1653 = vpop.f32.mrb[0].mxu0
    %v1654 = vadd.f32 %v1570, %v1653
    %v1655 = vpop.f32.mrb[0].mxu0
    %v1656 = vpop.f32.mrb[0].mxu0
    %v1657 = vadd.f32 %v1570, %v1656
    %v1658 = vpop.f32.mrb[0].mxu0
    %1659 = vdwg.mxu0
    %1660 = vst [vmem:[#allocation11] sm:$0xff] %v1654
    %1661 = vst [vmem:[#allocation11 + $0x8] sm:$0xff] %v1657
    // Predicated region
    $region42: #{tpu_custom_call.1} parent=1 // pred_check
      _
    $region43: #{tpu_custom_call.1} parent=1 // pred_check_branch
      %1663 = sbr.rel (0) target = $region45
    $region44: #{tpu_custom_call.1} parent=1 // pred_region
      %s1665 = ssub.s32 256, 256
      %1666 = vsyncadd [#allocation4], %s1665
      %s1667 = sshll.u32 [#allocation11], 4
      %s1668 = int_to_ptr.vmem [resolvable:$true] %s1667
      %1673 = dma.vmem_to_hbm [thread:$0]  %s1668, 256, %s5, [#allocation4], 128, 128, 8
    $region45: #{tpu_custom_call.1} parent=1 // pred_fallthru
      _
    // Predicated region
    $region46: #{tpu_custom_call.1} parent=1 // pred_check
      _
    $region47: #{tpu_custom_call.1} parent=1 // pred_check_branch
      %1675 = sbr.rel (0) target = $region49
    $region48: #{tpu_custom_call.1} parent=1 // pred_region
      %1676 = dma.done [#allocation4], 256
    $region49: #{tpu_custom_call.1} parent=1 // pred_fallthru
      _
    %1677 = vsyncpa [#allocation3], 1
    %1678 = vsyncpa [#allocation6], 1
    %1679 = vsyncpa [#allocation9], 1
    %1680 = vsyncpa [#allocation4], 1

</llo_original>
